<compile_context>
chip_gen: v7x
topology: tpu7x:2x2x1
jax: 0.10.0
libtpu: 0.0.40
codegen_flags: <defaults>
</compile_context>

<pallas_src>
import functools

import jax
import jax.numpy as jnp
from jax.experimental import pallas as pl
from jax.experimental.pallas import tpu as pltpu

LN_EPS = 1e-5  # torch.nn.LayerNorm default

_LAYER_KEYS = ("ln1_g", "ln1_b", "w_qkv", "w_out", "b_out",
               "ln2_g", "ln2_b", "w_ff1", "b_ff1", "w_ff2", "b_ff2")


def _layernorm(x, gamma, beta):
    mu = jnp.mean(x, axis=-1, keepdims=True)
    var = jnp.mean(jnp.square(x - mu), axis=-1, keepdims=True)
    return (x - mu) * jax.lax.rsqrt(var + LN_EPS) * gamma + beta


def fused_transformer_kernel(x_ref,
                             ln1_g, ln1_b, w_qkv, w_out, b_out,
                             ln2_g, ln2_b, w_ff1, b_ff1, w_ff2, b_ff2,
                             w_logit, b_logit,
                             o_ref, h_ref,
                             *, heads, dim_head, seq):
    """One (batch_block, layer) grid step.

    grid = (num_batch_blocks ['parallel'], depth ['arbitrary']); the (rows, D)
    activation lives in the h_ref VMEM scratch for the whole layer stack of a
    batch block.  HBM only sees the input embeddings and the final padded
    logits.
    """
    layer = pl.program_id(1)
    rows = h_ref.shape[0]            # batch_block * seq
    bb = rows // seq
    inner = heads * dim_head
    scale = dim_head ** -0.5
    bf16 = jnp.bfloat16
    f32 = jnp.float32

    @pl.when(layer == 0)
    def _():
        h_ref[...] = x_ref[...]

    x = h_ref[...]                                                   # (rows, D) f32
    d_model = x.shape[-1]

    # ---- PreNorm(Attention) + residual ----
    xn = _layernorm(x, ln1_g[0], ln1_b[0])
    qkv = jnp.dot(xn.astype(bf16), w_qkv[0].astype(bf16),
                  preferred_element_type=f32)                        # (rows, 3*inner)
    w_out_bf = w_out[0].astype(bf16)                                 # (inner, D)

    attn = jnp.zeros((rows, d_model), f32)
    # Static loop over heads; each head is a batch-dim (leading) batched einsum,
    # and the head concat is folded into per-head row-slices of w_out.
    for h in range(heads):
        lo = h * dim_head
        qh = qkv[:, lo:lo + dim_head].reshape(bb, seq, dim_head)
        kh = qkv[:, inner + lo:inner + lo + dim_head].reshape(bb, seq, dim_head)
        vh = qkv[:, 2 * inner + lo:2 * inner + lo + dim_head].reshape(bb, seq, dim_head)
        s = jnp.einsum('bnd,bmd->bnm', qh.astype(bf16), kh.astype(bf16),
                       preferred_element_type=f32) * scale           # (bb, N, N)
        s = s - jnp.max(s, axis=-1, keepdims=True)
        p = jnp.exp(s)
        p = p * pl.reciprocal(jnp.sum(p, axis=-1, keepdims=True), approx=True)
        oh = jnp.einsum('bnm,bmd->bnd', p.astype(bf16), vh.astype(bf16),
                        preferred_element_type=f32)                  # (bb, N, dh)
        attn = attn + jnp.dot(oh.reshape(rows, dim_head).astype(bf16),
                              w_out_bf[lo:lo + dim_head, :],
                              preferred_element_type=f32)
    x = x + attn + b_out[0]

    # ---- PreNorm(FeedForward) + residual ----
    xn = _layernorm(x, ln2_g[0], ln2_b[0])
    h1 = jnp.dot(xn.astype(bf16), w_ff1[0].astype(bf16),
                 preferred_element_type=f32) + b_ff1[0]
    # TODO(synk): torch.nn.GELU defaults to exact (erf) GELU; tanh approximation used here.
    h1 = jax.nn.gelu(h1, approximate=True)
    h2 = jnp.dot(h1.astype(bf16), w_ff2[0].astype(bf16),
                 preferred_element_type=f32) + b_ff2[0]
    x = x + h2

    h_ref[...] = x

    # ---- final logit projection (lane-dense padded width) on the last layer ----
    @pl.when(layer == pl.num_programs(1) - 1)
    def _():
        o_ref[...] = (jnp.dot(x.astype(bf16), w_logit[...].astype(bf16),
                              preferred_element_type=f32)
                      + b_logit[...]).astype(o_ref.dtype)


def fused_forward(h0, layers, w_logit_p, b_logit_p, *,
                  heads, dim_head, seq, batch_block):
    BN, D = h0.shape
    depth = layers["w_qkv"].shape[0]
    Cp = w_logit_p.shape[1]
    rows = batch_block * seq
    assert BN % rows == 0 and (rows % 8 == 0 or rows == BN), (BN, rows)
    nb = BN // rows

    weights = [layers[k] for k in _LAYER_KEYS]

    def stacked_spec(a):
        # one layer's slice of the depth-stacked weight per grid step
        return pl.BlockSpec((1,) + a.shape[1:], lambda b, l: (l, 0, 0))

    def const_spec(a):
        nd = a.ndim
        return pl.BlockSpec(a.shape, lambda b, l: (0,) * nd)

    kernel = functools.partial(fused_transformer_kernel,
                               heads=heads, dim_head=dim_head, seq=seq)

    # NOTE: at production dims (large mlp_dim / dim on v7x's 64 MiB VMEM) add
    # pltpu.CompilerParams(vmem_limit_bytes=...) and tile the FF matmuls over
    # mlp_dim; unnecessary at these toy shapes.
    return pl.pallas_call(
        kernel,
        out_shape=jax.ShapeDtypeStruct((BN, Cp), jnp.float32),
        grid=(nb, depth),
        in_specs=([pl.BlockSpec((rows, D), lambda b, l: (b, 0))]
                  + [stacked_spec(w) for w in weights]
                  + [const_spec(w_logit_p), const_spec(b_logit_p)]),
        out_specs=pl.BlockSpec((rows, Cp), lambda b, l: (b, 0)),
        scratch_shapes=[pltpu.VMEM((rows, D), jnp.float32)],
        compiler_params=pltpu.CompilerParams(
            dimension_semantics=("parallel", "arbitrary")),
    )(h0, *weights, w_logit_p, b_logit_p)


# ---------------------------------------------------------------------------
# Parameter construction (deterministic, synthetic). Per-layer weights are
# stacked along a leading depth axis so one pallas_call can stream them.
# ---------------------------------------------------------------------------
def init_params(key, *, shape, dim, num_classes, depth, heads, dim_head, mlp_dim):
    S, H, W = shape
    inner = heads * dim_head

    def normal(k, shp, scale=0.02):
        return (scale * jax.random.normal(k, shp)).astype(jnp.float32)

    keys = iter(jax.random.split(key, 9))
    params = {
        "embedding": normal(next(keys), (num_classes + 1, dim)),
        "pos_s": normal(next(keys), (S, dim)),
        "pos_h": normal(next(keys), (H, dim)),
        "pos_w": normal(next(keys), (W, dim)),
        "w_logit": normal(next(keys), (dim, num_classes)),
        "b_logit": jnp.zeros((1, num_classes), jnp.float32),
        "layers": {
            "ln1_g": jnp.ones((depth, 1, dim), jnp.float32),
            "ln1_b": jnp.zeros((depth, 1, dim), jnp.float32),
            "w_qkv": normal(next(keys), (depth, dim, 3 * inner)),   # Linear(dim, 3*inner, bias=False)
            "w_out": normal(next(keys), (depth, inner, dim)),
            "b_out": jnp.zeros((depth, 1, dim), jnp.float32),
            "ln2_g": jnp.ones((depth, 1, dim), jnp.float32),
            "ln2_b": jnp.zeros((depth, 1, dim), jnp.float32),
            "w_ff1": normal(next(keys), (depth, dim, mlp_dim)),
            "b_ff1": jnp.zeros((depth, 1, mlp_dim), jnp.float32),
            "w_ff2": normal(next(keys), (depth, mlp_dim, dim)),
            "b_ff2": jnp.zeros((depth, 1, dim), jnp.float32),
        },
    }
    return params


# ---------------------------------------------------------------------------
# Forward pass (matches VqSparseDiffusionModel.forward).
# ---------------------------------------------------------------------------
def vq_sparse_diffusion_forward(params, x_tokens, indices, *, shape, heads, dim_head,
                                batch_block=None):
    S, H, W = shape
    B, N = x_tokens.shape
    D = params["embedding"].shape[1]
    C = params["w_logit"].shape[1]

    # TODO(synk): embedding / 3-D positional gathers stay as plain-JAX glue
    # (XLA fuses them into one (B,N,D) slab feeding the fused kernel).
    emb = jnp.take(params["embedding"], x_tokens, axis=0)            # (B, N, D)
    w_pos = indices % W
    h_pos = (indices // W) % H
    s_pos = indices // (H * W)
    h0 = (emb
          + jnp.take(params["pos_s"], s_pos, axis=0)
          + jnp.take(params["pos_h"], h_pos, axis=0)
          + jnp.take(params["pos_w"], w_pos, axis=0)).reshape(B * N, D)

    # lane-dense padded logit head; sliced back after the kernel
    Cp = ((C + 127) // 128) * 128
    w_logit_p = jnp.pad(params["w_logit"], ((0, 0), (0, Cp - C)))
    b_logit_p = jnp.pad(params["b_logit"], ((0, 0), (0, Cp - C)))

    bb = B if batch_block is None else batch_block
    logits_p = fused_forward(h0, params["layers"], w_logit_p, b_logit_p,
                             heads=heads, dim_head=dim_head, seq=N, batch_block=bb)
    return logits_p.reshape(B, N, Cp)[:, :, :C]


if __name__ == "__main__":
    # Small config consistent with the module's __init__.
    shape = (2, 4, 4)          # (S, H, W) -> S*H*W = 32 grid positions
    dim = 32
    num_classes = 8
    depth = 2
    heads = 2
    dim_head = 16
    mlp_dim = 64
    batch, seq = 2, 16

    key = jax.random.PRNGKey(0)
    kp, kx, ki = jax.random.split(key, 3)

    params = init_params(kp, shape=shape, dim=dim, num_classes=num_classes,
                         depth=depth, heads=heads, dim_head=dim_head,
                         mlp_dim=mlp_dim)

    # tokens in [0, num_classes] (the "+1" mask token included), indices in [0, S*H*W)
    x_tokens = jax.random.randint(kx, (batch, seq), 0, num_classes + 1, dtype=jnp.int32)
    indices = jax.random.randint(ki, (batch, seq), 0,
                                 shape[0] * shape[1] * shape[2], dtype=jnp.int32)

    fwd = jax.jit(functools.partial(vq_sparse_diffusion_forward,
                                    shape=shape, heads=heads, dim_head=dim_head))
    logits = fwd(params, x_tokens, indices)
    jax.block_until_ready(logits)

    assert logits.shape == (batch, seq, num_classes), logits.shape
    assert bool(jnp.all(jnp.isfinite(logits)))
    print("KERNEL_OK")
</pallas_src>

<mosaic_0001>
module attributes {stable_mosaic.version = 11 : i64} {
  func.func @fused_transformer_kernel(%arg0: i32, %arg1: i32, %arg2: memref<32x32xf32, #tpu.memory_space<vmem>>, %arg3: memref<1x1x32xf32, #tpu.memory_space<vmem>>, %arg4: memref<1x1x32xf32, #tpu.memory_space<vmem>>, %arg5: memref<1x32x96xf32, #tpu.memory_space<vmem>>, %arg6: memref<1x32x32xf32, #tpu.memory_space<vmem>>, %arg7: memref<1x1x32xf32, #tpu.memory_space<vmem>>, %arg8: memref<1x1x32xf32, #tpu.memory_space<vmem>>, %arg9: memref<1x1x32xf32, #tpu.memory_space<vmem>>, %arg10: memref<1x32x64xf32, #tpu.memory_space<vmem>>, %arg11: memref<1x1x64xf32, #tpu.memory_space<vmem>>, %arg12: memref<1x64x32xf32, #tpu.memory_space<vmem>>, %arg13: memref<1x1x32xf32, #tpu.memory_space<vmem>>, %arg14: memref<32x128xf32, #tpu.memory_space<vmem>>, %arg15: memref<1x128xf32, #tpu.memory_space<vmem>>, %arg16: memref<32x128xf32, #tpu.memory_space<vmem>>, %arg17: memref<32x32xf32, #tpu.memory_space<vmem>>) attributes {dimension_semantics = [#tpu.dimension_semantics<parallel>, #tpu.dimension_semantics<arbitrary>], iteration_bounds = array<i64: 1, 2>, scalar_prefetch = 0 : i64, scratch_operands = 1 : i64, tpu.core_type = #tpu.core_type<tc>, window_params = [{transform_indices = @transform_0, window_bounds = array<i64: 32, 32>}, {transform_indices = @transform_1, window_bounds = array<i64: 1, 1, 32>}, {transform_indices = @transform_2, window_bounds = array<i64: 1, 1, 32>}, {transform_indices = @transform_3, window_bounds = array<i64: 1, 32, 96>}, {transform_indices = @transform_4, window_bounds = array<i64: 1, 32, 32>}, {transform_indices = @transform_5, window_bounds = array<i64: 1, 1, 32>}, {transform_indices = @transform_6, window_bounds = array<i64: 1, 1, 32>}, {transform_indices = @transform_7, window_bounds = array<i64: 1, 1, 32>}, {transform_indices = @transform_8, window_bounds = array<i64: 1, 32, 64>}, {transform_indices = @transform_9, window_bounds = array<i64: 1, 1, 64>}, {transform_indices = @transform_10, window_bounds = array<i64: 1, 64, 32>}, {transform_indices = @transform_11, window_bounds = array<i64: 1, 1, 32>}, {pipeline_mode = #tpu.pipeline_mode<synchronous>, transform_indices = @transform_12, window_bounds = array<i64: 32, 128>}, {pipeline_mode = #tpu.pipeline_mode<synchronous>, transform_indices = @transform_13, window_bounds = array<i64: 1, 128>}, {transform_indices = @transform_14, window_bounds = array<i64: 32, 128>}]} {
    %c0_i32 = arith.constant 0 : i32
    %0 = arith.cmpi eq, %arg1, %c0_i32 : i32
    %1 = arith.extui %0 : i1 to i32
    %c0_i32_0 = arith.constant 0 : i32
    %2 = arith.cmpi ne, %1, %c0_i32_0 : i32
    scf.if %2 {
      %c0_67 = arith.constant 0 : index
      %c0_68 = arith.constant 0 : index
      %164 = vector.load %arg2[%c0_67, %c0_68] : memref<32x32xf32, #tpu.memory_space<vmem>>, vector<32x32xf32>
      %c0_69 = arith.constant 0 : index
      %c0_70 = arith.constant 0 : index
      %165 = vector.load %arg17[%c0_69, %c0_70] : memref<32x32xf32, #tpu.memory_space<vmem>>, vector<32x32xf32>
      tpu.vector_store %arg17[%c0_69, %c0_70], %164 {strides = array<i32>} : memref<32x32xf32, #tpu.memory_space<vmem>>, vector<32x32xf32>,
    } else {
    }
    %c0 = arith.constant 0 : index
    %c0_1 = arith.constant 0 : index
    %3 = vector.load %arg17[%c0, %c0_1] : memref<32x32xf32, #tpu.memory_space<vmem>>, vector<32x32xf32>
    %c0_2 = arith.constant 0 : index
    %c0_3 = arith.constant 0 : index
    %c0_4 = arith.constant 0 : index
    %4 = vector.load %arg3[%c0_2, %c0_3, %c0_4] : memref<1x1x32xf32, #tpu.memory_space<vmem>>, vector<1x1x32xf32>
    %5 = vector.shape_cast %4 : vector<1x1x32xf32> to vector<1x32xf32>
    %c0_5 = arith.constant 0 : index
    %c0_6 = arith.constant 0 : index
    %c0_7 = arith.constant 0 : index
    %6 = vector.load %arg4[%c0_5, %c0_6, %c0_7] : memref<1x1x32xf32, #tpu.memory_space<vmem>>, vector<1x1x32xf32>
    %7 = vector.shape_cast %6 : vector<1x1x32xf32> to vector<1x32xf32>
    %cst = arith.constant dense<0.000000e+00> : vector<32xf32>
    %8 = vector.multi_reduction <add>, %3, %cst [1] : vector<32x32xf32> to vector<32xf32>
    %9 = vector.shape_cast %8 : vector<32xf32> to vector<32x1xf32>
    %cst_8 = arith.constant 3.200000e+01 : f32
    %10 = vector.broadcast %cst_8 : f32 to vector<32x1xf32>
    %11 = arith.divf %9, %10 : vector<32x1xf32>
    %12 = vector.broadcast %11 : vector<32x1xf32> to vector<32x32xf32>
    %13 = arith.subf %3, %12 : vector<32x32xf32>
    %14 = arith.mulf %13, %13 : vector<32x32xf32>
    %cst_9 = arith.constant dense<0.000000e+00> : vector<32xf32>
    %15 = vector.multi_reduction <add>, %14, %cst_9 [1] : vector<32x32xf32> to vector<32xf32>
    %16 = vector.shape_cast %15 : vector<32xf32> to vector<32x1xf32>
    %cst_10 = arith.constant 3.200000e+01 : f32
    %17 = vector.broadcast %cst_10 : f32 to vector<32x1xf32>
    %18 = arith.divf %16, %17 : vector<32x1xf32>
    %19 = vector.broadcast %11 : vector<32x1xf32> to vector<32x32xf32>
    %20 = arith.subf %3, %19 : vector<32x32xf32>
    %cst_11 = arith.constant 9.99999974E-6 : f32
    %21 = vector.broadcast %cst_11 : f32 to vector<32x1xf32>
    %22 = arith.addf %18, %21 : vector<32x1xf32>
    %23 = math.rsqrt %22 : vector<32x1xf32>
    %24 = vector.broadcast %23 : vector<32x1xf32> to vector<32x32xf32>
    %25 = arith.mulf %20, %24 : vector<32x32xf32>
    %26 = vector.broadcast %5 : vector<1x32xf32> to vector<32x32xf32>
    %27 = arith.mulf %25, %26 : vector<32x32xf32>
    %28 = vector.broadcast %7 : vector<1x32xf32> to vector<32x32xf32>
    %29 = arith.addf %27, %28 : vector<32x32xf32>
    %30 = arith.truncf %29 : vector<32x32xf32> to vector<32x32xbf16>
    %c0_12 = arith.constant 0 : index
    %c0_13 = arith.constant 0 : index
    %c0_14 = arith.constant 0 : index
    %31 = vector.load %arg5[%c0_12, %c0_13, %c0_14] : memref<1x32x96xf32, #tpu.memory_space<vmem>>, vector<1x32x96xf32>
    %32 = vector.shape_cast %31 : vector<1x32x96xf32> to vector<32x96xf32>
    %33 = arith.truncf %32 : vector<32x96xf32> to vector<32x96xbf16>
    %cst_15 = arith.constant dense<0.000000e+00> : vector<32x96xf32>
    %34 = tpu.matmul %30, %33, %cst_15 {dimension_numbers = #tpu.dot_dimension_numbers<[1], [0], [0], [1], [0, 0, 1, 1], [], []>} : vector<32x32xbf16>, vector<32x96xbf16>, vector<32x96xf32> -> vector<32x96xf32>
    %c0_16 = arith.constant 0 : index
    %c0_17 = arith.constant 0 : index
    %c0_18 = arith.constant 0 : index
    %35 = vector.load %arg6[%c0_16, %c0_17, %c0_18] : memref<1x32x32xf32, #tpu.memory_space<vmem>>, vector<1x32x32xf32>
    %36 = vector.shape_cast %35 : vector<1x32x32xf32> to vector<32x32xf32>
    %37 = arith.truncf %36 : vector<32x32xf32> to vector<32x32xbf16>
    %cst_19 = arith.constant 0.000000e+00 : f32
    %38 = vector.broadcast %cst_19 : f32 to vector<32x32xf32>
    %39 = vector.extract_strided_slice %34 {offsets = [0, 0], sizes = [32, 16], strides = [1, 1]} : vector<32x96xf32> to vector<32x16xf32>
    %40 = vector.shape_cast %39 : vector<32x16xf32> to vector<2x16x16xf32>
    %41 = vector.extract_strided_slice %34 {offsets = [0, 32], sizes = [32, 16], strides = [1, 1]} : vector<32x96xf32> to vector<32x16xf32>
    %42 = vector.shape_cast %41 : vector<32x16xf32> to vector<2x16x16xf32>
    %43 = vector.extract_strided_slice %34 {offsets = [0, 64], sizes = [32, 16], strides = [1, 1]} : vector<32x96xf32> to vector<32x16xf32>
    %44 = vector.shape_cast %43 : vector<32x16xf32> to vector<2x16x16xf32>
    %45 = arith.truncf %40 : vector<2x16x16xf32> to vector<2x16x16xbf16>
    %46 = arith.truncf %42 : vector<2x16x16xf32> to vector<2x16x16xbf16>
    "tpu.trace_start"() <{level = 10 : i32, message = "bnd,bmd->bnm"}> : () -> ()
    %cst_20 = arith.constant dense<0.000000e+00> : vector<2x16x16xf32>
    %47 = tpu.matmul %45, %46, %cst_20 {dimension_numbers = #tpu.dot_dimension_numbers<[2], [2], [1], [1], [0, 0, 0, 1, 1, 1], [0], [0]>} : vector<2x16x16xbf16>, vector<2x16x16xbf16>, vector<2x16x16xf32> -> vector<2x16x16xf32>
    "tpu.trace_stop"() : () -> ()
    %cst_21 = arith.constant 2.500000e-01 : f32
    %48 = vector.broadcast %cst_21 : f32 to vector<2x16x16xf32>
    %49 = arith.mulf %47, %48 : vector<2x16x16xf32>
    %cst_22 = arith.constant dense<0xFF800000> : vector<2x16xf32>
    %50 = vector.multi_reduction <maximumf>, %49, %cst_22 [2] : vector<2x16x16xf32> to vector<2x16xf32>
    %51 = vector.shape_cast %50 : vector<2x16xf32> to vector<2x16x1xf32>
    %52 = vector.broadcast %51 : vector<2x16x1xf32> to vector<2x16x16xf32>
    %53 = arith.subf %49, %52 : vector<2x16x16xf32>
    %54 = math.exp %53 : vector<2x16x16xf32>
    %cst_23 = arith.constant dense<0.000000e+00> : vector<2x16xf32>
    %55 = vector.multi_reduction <add>, %54, %cst_23 [2] : vector<2x16x16xf32> to vector<2x16xf32>
    %56 = vector.shape_cast %55 : vector<2x16xf32> to vector<2x16x1xf32>
    %57 = tpu.reciprocal %56 {approx = true} : vector<2x16x1xf32> -> vector<2x16x1xf32>
    %58 = vector.broadcast %57 : vector<2x16x1xf32> to vector<2x16x16xf32>
    %59 = arith.mulf %54, %58 : vector<2x16x16xf32>
    %60 = arith.truncf %59 : vector<2x16x16xf32> to vector<2x16x16xbf16>
    %61 = arith.truncf %44 : vector<2x16x16xf32> to vector<2x16x16xbf16>
    "tpu.trace_start"() <{level = 10 : i32, message = "bnm,bmd->bnd"}> : () -> ()
    %cst_24 = arith.constant dense<0.000000e+00> : vector<2x16x16xf32>
    %62 = tpu.matmul %60, %61, %cst_24 {dimension_numbers = #tpu.dot_dimension_numbers<[2], [1], [1], [2], [0, 0, 0, 1, 1, 2], [0], [0]>} : vector<2x16x16xbf16>, vector<2x16x16xbf16>, vector<2x16x16xf32> -> vector<2x16x16xf32>
    "tpu.trace_stop"() : () -> ()
    %63 = vector.shape_cast %62 : vector<2x16x16xf32> to vector<32x16xf32>
    %64 = arith.truncf %63 : vector<32x16xf32> to vector<32x16xbf16>
    %65 = vector.extract_strided_slice %37 {offsets = [0, 0], sizes = [16, 32], strides = [1, 1]} : vector<32x32xbf16> to vector<16x32xbf16>
    %cst_25 = arith.constant dense<0.000000e+00> : vector<32x32xf32>
    %66 = tpu.matmul %64, %65, %cst_25 {dimension_numbers = #tpu.dot_dimension_numbers<[1], [0], [0], [1], [0, 0, 1, 1], [], []>} : vector<32x16xbf16>, vector<16x32xbf16>, vector<32x32xf32> -> vector<32x32xf32>
    %67 = arith.addf %38, %66 : vector<32x32xf32>
    %68 = vector.extract_strided_slice %34 {offsets = [0, 16], sizes = [32, 16], strides = [1, 1]} : vector<32x96xf32> to vector<32x16xf32>
    %69 = vector.shape_cast %68 : vector<32x16xf32> to vector<2x16x16xf32>
    %70 = vector.extract_strided_slice %34 {offsets = [0, 48], sizes = [32, 16], strides = [1, 1]} : vector<32x96xf32> to vector<32x16xf32>
    %71 = vector.shape_cast %70 : vector<32x16xf32> to vector<2x16x16xf32>
    %72 = vector.extract_strided_slice %34 {offsets = [0, 80], sizes = [32, 16], strides = [1, 1]} : vector<32x96xf32> to vector<32x16xf32>
    %73 = vector.shape_cast %72 : vector<32x16xf32> to vector<2x16x16xf32>
    %74 = arith.truncf %69 : vector<2x16x16xf32> to vector<2x16x16xbf16>
    %75 = arith.truncf %71 : vector<2x16x16xf32> to vector<2x16x16xbf16>
    "tpu.trace_start"() <{level = 10 : i32, message = "bnd,bmd->bnm"}> : () -> ()
    %cst_26 = arith.constant dense<0.000000e+00> : vector<2x16x16xf32>
    %76 = tpu.matmul %74, %75, %cst_26 {dimension_numbers = #tpu.dot_dimension_numbers<[2], [2], [1], [1], [0, 0, 0, 1, 1, 1], [0], [0]>} : vector<2x16x16xbf16>, vector<2x16x16xbf16>, vector<2x16x16xf32> -> vector<2x16x16xf32>
    "tpu.trace_stop"() : () -> ()
    %cst_27 = arith.constant 2.500000e-01 : f32
    %77 = vector.broadcast %cst_27 : f32 to vector<2x16x16xf32>
    %78 = arith.mulf %76, %77 : vector<2x16x16xf32>
    %cst_28 = arith.constant dense<0xFF800000> : vector<2x16xf32>
    %79 = vector.multi_reduction <maximumf>, %78, %cst_28 [2] : vector<2x16x16xf32> to vector<2x16xf32>
    %80 = vector.shape_cast %79 : vector<2x16xf32> to vector<2x16x1xf32>
    %81 = vector.broadcast %80 : vector<2x16x1xf32> to vector<2x16x16xf32>
    %82 = arith.subf %78, %81 : vector<2x16x16xf32>
    %83 = math.exp %82 : vector<2x16x16xf32>
    %cst_29 = arith.constant dense<0.000000e+00> : vector<2x16xf32>
    %84 = vector.multi_reduction <add>, %83, %cst_29 [2] : vector<2x16x16xf32> to vector<2x16xf32>
    %85 = vector.shape_cast %84 : vector<2x16xf32> to vector<2x16x1xf32>
    %86 = tpu.reciprocal %85 {approx = true} : vector<2x16x1xf32> -> vector<2x16x1xf32>
    %87 = vector.broadcast %86 : vector<2x16x1xf32> to vector<2x16x16xf32>
    %88 = arith.mulf %83, %87 : vector<2x16x16xf32>
    %89 = arith.truncf %88 : vector<2x16x16xf32> to vector<2x16x16xbf16>
    %90 = arith.truncf %73 : vector<2x16x16xf32> to vector<2x16x16xbf16>
    "tpu.trace_start"() <{level = 10 : i32, message = "bnm,bmd->bnd"}> : () -> ()
    %cst_30 = arith.constant dense<0.000000e+00> : vector<2x16x16xf32>
    %91 = tpu.matmul %89, %90, %cst_30 {dimension_numbers = #tpu.dot_dimension_numbers<[2], [1], [1], [2], [0, 0, 0, 1, 1, 2], [0], [0]>} : vector<2x16x16xbf16>, vector<2x16x16xbf16>, vector<2x16x16xf32> -> vector<2x16x16xf32>
    "tpu.trace_stop"() : () -> ()
    %92 = vector.shape_cast %91 : vector<2x16x16xf32> to vector<32x16xf32>
    %93 = arith.truncf %92 : vector<32x16xf32> to vector<32x16xbf16>
    %94 = vector.extract_strided_slice %37 {offsets = [16, 0], sizes = [16, 32], strides = [1, 1]} : vector<32x32xbf16> to vector<16x32xbf16>
    %cst_31 = arith.constant dense<0.000000e+00> : vector<32x32xf32>
    %95 = tpu.matmul %93, %94, %cst_31 {dimension_numbers = #tpu.dot_dimension_numbers<[1], [0], [0], [1], [0, 0, 1, 1], [], []>} : vector<32x16xbf16>, vector<16x32xbf16>, vector<32x32xf32> -> vector<32x32xf32>
    %96 = arith.addf %67, %95 : vector<32x32xf32>
    %97 = arith.addf %3, %96 : vector<32x32xf32>
    %c0_32 = arith.constant 0 : index
    %c0_33 = arith.constant 0 : index
    %c0_34 = arith.constant 0 : index
    %98 = vector.load %arg7[%c0_32, %c0_33, %c0_34] : memref<1x1x32xf32, #tpu.memory_space<vmem>>, vector<1x1x32xf32>
    %99 = vector.shape_cast %98 : vector<1x1x32xf32> to vector<1x32xf32>
    %100 = vector.broadcast %99 : vector<1x32xf32> to vector<32x32xf32>
    %101 = arith.addf %97, %100 : vector<32x32xf32>
    %c0_35 = arith.constant 0 : index
    %c0_36 = arith.constant 0 : index
    %c0_37 = arith.constant 0 : index
    %102 = vector.load %arg8[%c0_35, %c0_36, %c0_37] : memref<1x1x32xf32, #tpu.memory_space<vmem>>, vector<1x1x32xf32>
    %103 = vector.shape_cast %102 : vector<1x1x32xf32> to vector<1x32xf32>
    %c0_38 = arith.constant 0 : index
    %c0_39 = arith.constant 0 : index
    %c0_40 = arith.constant 0 : index
    %104 = vector.load %arg9[%c0_38, %c0_39, %c0_40] : memref<1x1x32xf32, #tpu.memory_space<vmem>>, vector<1x1x32xf32>
    %105 = vector.shape_cast %104 : vector<1x1x32xf32> to vector<1x32xf32>
    %cst_41 = arith.constant dense<0.000000e+00> : vector<32xf32>
    %106 = vector.multi_reduction <add>, %101, %cst_41 [1] : vector<32x32xf32> to vector<32xf32>
    %107 = vector.shape_cast %106 : vector<32xf32> to vector<32x1xf32>
    %cst_42 = arith.constant 3.200000e+01 : f32
    %108 = vector.broadcast %cst_42 : f32 to vector<32x1xf32>
    %109 = arith.divf %107, %108 : vector<32x1xf32>
    %110 = vector.broadcast %109 : vector<32x1xf32> to vector<32x32xf32>
    %111 = arith.subf %101, %110 : vector<32x32xf32>
    %112 = arith.mulf %111, %111 : vector<32x32xf32>
    %cst_43 = arith.constant dense<0.000000e+00> : vector<32xf32>
    %113 = vector.multi_reduction <add>, %112, %cst_43 [1] : vector<32x32xf32> to vector<32xf32>
    %114 = vector.shape_cast %113 : vector<32xf32> to vector<32x1xf32>
    %cst_44 = arith.constant 3.200000e+01 : f32
    %115 = vector.broadcast %cst_44 : f32 to vector<32x1xf32>
    %116 = arith.divf %114, %115 : vector<32x1xf32>
    %117 = vector.broadcast %109 : vector<32x1xf32> to vector<32x32xf32>
    %118 = arith.subf %101, %117 : vector<32x32xf32>
    %cst_45 = arith.constant 9.99999974E-6 : f32
    %119 = vector.broadcast %cst_45 : f32 to vector<32x1xf32>
    %120 = arith.addf %116, %119 : vector<32x1xf32>
    %121 = math.rsqrt %120 : vector<32x1xf32>
    %122 = vector.broadcast %121 : vector<32x1xf32> to vector<32x32xf32>
    %123 = arith.mulf %118, %122 : vector<32x32xf32>
    %124 = vector.broadcast %103 : vector<1x32xf32> to vector<32x32xf32>
    %125 = arith.mulf %123, %124 : vector<32x32xf32>
    %126 = vector.broadcast %105 : vector<1x32xf32> to vector<32x32xf32>
    %127 = arith.addf %125, %126 : vector<32x32xf32>
    %128 = arith.truncf %127 : vector<32x32xf32> to vector<32x32xbf16>
    %c0_46 = arith.constant 0 : index
    %c0_47 = arith.constant 0 : index
    %c0_48 = arith.constant 0 : index
    %129 = vector.load %arg10[%c0_46, %c0_47, %c0_48] : memref<1x32x64xf32, #tpu.memory_space<vmem>>, vector<1x32x64xf32>
    %130 = vector.shape_cast %129 : vector<1x32x64xf32> to vector<32x64xf32>
    %131 = arith.truncf %130 : vector<32x64xf32> to vector<32x64xbf16>
    %cst_49 = arith.constant dense<0.000000e+00> : vector<32x64xf32>
    %132 = tpu.matmul %128, %131, %cst_49 {dimension_numbers = #tpu.dot_dimension_numbers<[1], [0], [0], [1], [0, 0, 1, 1], [], []>} : vector<32x32xbf16>, vector<32x64xbf16>, vector<32x64xf32> -> vector<32x64xf32>
    %c0_50 = arith.constant 0 : index
    %c0_51 = arith.constant 0 : index
    %c0_52 = arith.constant 0 : index
    %133 = vector.load %arg11[%c0_50, %c0_51, %c0_52] : memref<1x1x64xf32, #tpu.memory_space<vmem>>, vector<1x1x64xf32>
    %134 = vector.shape_cast %133 : vector<1x1x64xf32> to vector<1x64xf32>
    %135 = vector.broadcast %134 : vector<1x64xf32> to vector<32x64xf32>
    %136 = arith.addf %132, %135 : vector<32x64xf32>
    %137 = arith.mulf %136, %136 : vector<32x64xf32>
    %138 = arith.mulf %136, %137 : vector<32x64xf32>
    %cst_53 = arith.constant 4.471500e-02 : f32
    %139 = vector.broadcast %cst_53 : f32 to vector<32x64xf32>
    %140 = arith.mulf %139, %138 : vector<32x64xf32>
    %141 = arith.addf %136, %140 : vector<32x64xf32>
    %cst_54 = arith.constant 0.797884583 : f32
    %142 = vector.broadcast %cst_54 : f32 to vector<32x64xf32>
    %143 = arith.mulf %142, %141 : vector<32x64xf32>
    %144 = math.tanh %143 : vector<32x64xf32>
    %cst_55 = arith.constant 1.000000e+00 : f32
    %145 = vector.broadcast %cst_55 : f32 to vector<32x64xf32>
    %146 = arith.addf %145, %144 : vector<32x64xf32>
    %cst_56 = arith.constant 5.000000e-01 : f32
    %147 = vector.broadcast %cst_56 : f32 to vector<32x64xf32>
    %148 = arith.mulf %147, %146 : vector<32x64xf32>
    %149 = arith.mulf %136, %148 : vector<32x64xf32>
    %150 = arith.truncf %149 : vector<32x64xf32> to vector<32x64xbf16>
    %c0_57 = arith.constant 0 : index
    %c0_58 = arith.constant 0 : index
    %c0_59 = arith.constant 0 : index
    %151 = vector.load %arg12[%c0_57, %c0_58, %c0_59] : memref<1x64x32xf32, #tpu.memory_space<vmem>>, vector<1x64x32xf32>
    %152 = vector.shape_cast %151 : vector<1x64x32xf32> to vector<64x32xf32>
    %153 = arith.truncf %152 : vector<64x32xf32> to vector<64x32xbf16>
    %cst_60 = arith.constant dense<0.000000e+00> : vector<32x32xf32>
    %154 = tpu.matmul %150, %153, %cst_60 {dimension_numbers = #tpu.dot_dimension_numbers<[1], [0], [0], [1], [0, 0, 1, 1], [], []>} : vector<32x64xbf16>, vector<64x32xbf16>, vector<32x32xf32> -> vector<32x32xf32>
    %c0_61 = arith.constant 0 : index
    %c0_62 = arith.constant 0 : index
    %c0_63 = arith.constant 0 : index
    %155 = vector.load %arg13[%c0_61, %c0_62, %c0_63] : memref<1x1x32xf32, #tpu.memory_space<vmem>>, vector<1x1x32xf32>
    %156 = vector.shape_cast %155 : vector<1x1x32xf32> to vector<1x32xf32>
    %157 = vector.broadcast %156 : vector<1x32xf32> to vector<32x32xf32>
    %158 = arith.addf %154, %157 : vector<32x32xf32>
    %159 = arith.addf %101, %158 : vector<32x32xf32>
    %c0_64 = arith.constant 0 : index
    %c0_65 = arith.constant 0 : index
    %160 = vector.load %arg17[%c0_64, %c0_65] : memref<32x32xf32, #tpu.memory_space<vmem>>, vector<32x32xf32>
    tpu.vector_store %arg17[%c0_64, %c0_65], %159 {strides = array<i32>} : memref<32x32xf32, #tpu.memory_space<vmem>>, vector<32x32xf32>,
    %c1_i32 = arith.constant 1 : i32
    %161 = arith.cmpi eq, %arg1, %c1_i32 : i32
    %162 = arith.extui %161 : i1 to i32
    %c0_i32_66 = arith.constant 0 : i32
    %163 = arith.cmpi ne, %162, %c0_i32_66 : i32
    scf.if %163 {
      %164 = arith.truncf %159 : vector<32x32xf32> to vector<32x32xbf16>
      %c0_67 = arith.constant 0 : index
      %c0_68 = arith.constant 0 : index
      %165 = vector.load %arg14[%c0_67, %c0_68] : memref<32x128xf32, #tpu.memory_space<vmem>>, vector<32x128xf32>
      %166 = arith.truncf %165 : vector<32x128xf32> to vector<32x128xbf16>
      %cst_69 = arith.constant dense<0.000000e+00> : vector<32x128xf32>
      %167 = tpu.matmul %164, %166, %cst_69 {dimension_numbers = #tpu.dot_dimension_numbers<[1], [0], [0], [1], [0, 0, 1, 1], [], []>} : vector<32x32xbf16>, vector<32x128xbf16>, vector<32x128xf32> -> vector<32x128xf32>
      %c0_70 = arith.constant 0 : index
      %c0_71 = arith.constant 0 : index
      %168 = vector.load %arg15[%c0_70, %c0_71] : memref<1x128xf32, #tpu.memory_space<vmem>>, vector<1x128xf32>
      %169 = vector.broadcast %168 : vector<1x128xf32> to vector<32x128xf32>
      %170 = arith.addf %167, %169 : vector<32x128xf32>
      %c0_72 = arith.constant 0 : index
      %c0_73 = arith.constant 0 : index
      %171 = vector.load %arg16[%c0_72, %c0_73] : memref<32x128xf32, #tpu.memory_space<vmem>>, vector<32x128xf32>
      tpu.vector_store %arg16[%c0_72, %c0_73], %170 {strides = array<i32>} : memref<32x128xf32, #tpu.memory_space<vmem>>, vector<32x128xf32>,
    } else {
    }
    return
  }
  func.func @transform_0(%arg0: i32, %arg1: i32) -> (i32, i32) {
    %c0_i32 = arith.constant 0 : i32
    %c0_i32_0 = arith.constant 0 : i32
    return %arg0, %c0_i32 : i32, i32
  }
  func.func @transform_1(%arg0: i32, %arg1: i32) -> (i32, i32, i32) {
    %c0_i32 = arith.constant 0 : i32
    %c0_i32_0 = arith.constant 0 : i32
    %c0_i32_1 = arith.constant 0 : i32
    return %arg1, %c0_i32, %c0_i32_0 : i32, i32, i32
  }
  func.func @transform_2(%arg0: i32, %arg1: i32) -> (i32, i32, i32) {
    %c0_i32 = arith.constant 0 : i32
    %c0_i32_0 = arith.constant 0 : i32
    %c0_i32_1 = arith.constant 0 : i32
    return %arg1, %c0_i32, %c0_i32_0 : i32, i32, i32
  }
  func.func @transform_3(%arg0: i32, %arg1: i32) -> (i32, i32, i32) {
    %c0_i32 = arith.constant 0 : i32
    %c0_i32_0 = arith.constant 0 : i32
    %c0_i32_1 = arith.constant 0 : i32
    return %arg1, %c0_i32, %c0_i32_0 : i32, i32, i32
  }
  func.func @transform_4(%arg0: i32, %arg1: i32) -> (i32, i32, i32) {
    %c0_i32 = arith.constant 0 : i32
    %c0_i32_0 = arith.constant 0 : i32
    %c0_i32_1 = arith.constant 0 : i32
    return %arg1, %c0_i32, %c0_i32_0 : i32, i32, i32
  }
  func.func @transform_5(%arg0: i32, %arg1: i32) -> (i32, i32, i32) {
    %c0_i32 = arith.constant 0 : i32
    %c0_i32_0 = arith.constant 0 : i32
    %c0_i32_1 = arith.constant 0 : i32
    return %arg1, %c0_i32, %c0_i32_0 : i32, i32, i32
  }
  func.func @transform_6(%arg0: i32, %arg1: i32) -> (i32, i32, i32) {
    %c0_i32 = arith.constant 0 : i32
    %c0_i32_0 = arith.constant 0 : i32
    %c0_i32_1 = arith.constant 0 : i32
    return %arg1, %c0_i32, %c0_i32_0 : i32, i32, i32
  }
  func.func @transform_7(%arg0: i32, %arg1: i32) -> (i32, i32, i32) {
    %c0_i32 = arith.constant 0 : i32
    %c0_i32_0 = arith.constant 0 : i32
    %c0_i32_1 = arith.constant 0 : i32
    return %arg1, %c0_i32, %c0_i32_0 : i32, i32, i32
  }
  func.func @transform_8(%arg0: i32, %arg1: i32) -> (i32, i32, i32) {
    %c0_i32 = arith.constant 0 : i32
    %c0_i32_0 = arith.constant 0 : i32
    %c0_i32_1 = arith.constant 0 : i32
    return %arg1, %c0_i32, %c0_i32_0 : i32, i32, i32
  }
  func.func @transform_9(%arg0: i32, %arg1: i32) -> (i32, i32, i32) {
    %c0_i32 = arith.constant 0 : i32
    %c0_i32_0 = arith.constant 0 : i32
    %c0_i32_1 = arith.constant 0 : i32
    return %arg1, %c0_i32, %c0_i32_0 : i32, i32, i32
  }
  func.func @transform_10(%arg0: i32, %arg1: i32) -> (i32, i32, i32) {
    %c0_i32 = arith.constant 0 : i32
    %c0_i32_0 = arith.constant 0 : i32
    %c0_i32_1 = arith.constant 0 : i32
    return %arg1, %c0_i32, %c0_i32_0 : i32, i32, i32
  }
  func.func @transform_11(%arg0: i32, %arg1: i32) -> (i32, i32, i32) {
    %c0_i32 = arith.constant 0 : i32
    %c0_i32_0 = arith.constant 0 : i32
    %c0_i32_1 = arith.constant 0 : i32
    return %arg1, %c0_i32, %c0_i32_0 : i32, i32, i32
  }
  func.func @transform_12(%arg0: i32, %arg1: i32) -> (i32, i32) {
    %c0_i32 = arith.constant 0 : i32
    %c0_i32_0 = arith.constant 0 : i32
    %c0_i32_1 = arith.constant 0 : i32
    return %c0_i32, %c0_i32_0 : i32, i32
  }
  func.func @transform_13(%arg0: i32, %arg1: i32) -> (i32, i32) {
    %c0_i32 = arith.constant 0 : i32
    %c0_i32_0 = arith.constant 0 : i32
    %c0_i32_1 = arith.constant 0 : i32
    return %c0_i32, %c0_i32_0 : i32, i32
  }
  func.func @transform_14(%arg0: i32, %arg1: i32) -> (i32, i32) {
    %c0_i32 = arith.constant 0 : i32
    %c0_i32_0 = arith.constant 0 : i32
    return %arg0, %c0_i32 : i32, i32
  }
}

</mosaic_0001>

<llo_original>
// kernel: vq_sparse_diffusion_forward.1
$region0: #{vq_sparse_diffusion_forward.1}
  #allocation0 [shape = 'u32[]', space=smem, size = 0x4, offset = 0x4, fixed_abs, tag = 'smem constant byte address 0x4 - core index']
  #allocation1 [shape = 'u32[144,128]{1,0:T(1,128)}', space=vmem, size = 0x12000, scoped, tag = 'internal scratch']
  #allocation2 [shape = 'f32[32,32]{1,0:T(8,128)}', space=vmem, size = 0x4000, scoped, tag = 'scratch operand']
  %s0 = inlined_call_operand.vmem [shape: f32[32,32], index: 0, kind: input, shape index: {}]
  %s1 = inlined_call_operand.vmem [shape: f32[2,1,32], index: 1, kind: input, shape index: {}]
  %s2 = inlined_call_operand.vmem [shape: f32[2,1,32], index: 2, kind: input, shape index: {}]
  %s3 = inlined_call_operand.vmem [shape: f32[2,32,96], index: 3, kind: input, shape index: {}]
  %s4 = inlined_call_operand.vmem [shape: f32[2,32,32], index: 4, kind: input, shape index: {}]
  %s5 = inlined_call_operand.vmem [shape: f32[2,1,32], index: 5, kind: input, shape index: {}]
  %s6 = inlined_call_operand.vmem [shape: f32[2,1,32], index: 6, kind: input, shape index: {}]
  %s7 = inlined_call_operand.vmem [shape: f32[2,1,32], index: 7, kind: input, shape index: {}]
  %s8 = inlined_call_operand.vmem [shape: f32[2,32,64], index: 8, kind: input, shape index: {}]
  %s9 = inlined_call_operand.vmem [shape: f32[2,1,64], index: 9, kind: input, shape index: {}]
  %s10 = inlined_call_operand.vmem [shape: f32[2,64,32], index: 10, kind: input, shape index: {}]
  %s11 = inlined_call_operand.vmem [shape: f32[2,1,32], index: 11, kind: input, shape index: {}]
  %s12 = inlined_call_operand.vmem [shape: f32[32,128], index: 12, kind: input, shape index: {}]
  %s13 = inlined_call_operand.vmem [shape: f32[1,128], index: 13, kind: input, shape index: {}]
  %s14 = inlined_call_operand.vmem [shape: f32[32,128], index: 14, kind: output, shape index: {}]
  %s15 = sld [smem:[#allocation0]]
  $region97: #{vq_sparse_diffusion_forward.1} parent=0
    _
  %s17 = ssub.s32 1, %s15
  %s18 = scalar_select 0, %s17, %s15
  loop: start=0, step=1, limit=4
  $region2: #{vq_sparse_diffusion_forward.1} parent=0 // loop_pre_header
    _
  $region3: #{vq_sparse_diffusion_forward.1} parent=0 // loop_header
    %s20 = sphi 0, %s24
    %p21 = scmp.ge.s32.totalorder %s20, 4
    %s27 = sphi 0, %s39
    %s28 = sphi 0, %s35
    %s29 = sphi 0, %s27
    %s30 = sphi 0, %s28
    %s31 = sphi 0, %s29
    %s32 = sphi 0, %s30
    %s42 = sphi 0, %s44
    %s45 = sphi 0, %s42
    %s46 = sphi 0, %s45
    %s62 = sphi 0, %s46
    %s68 = sphi 0, %s70
    %s71 = sphi 0, %s68
    %s72 = sphi 0, %s71
    %s88 = sphi 0, %s72
    %s94 = sphi 0, %s96
    %s97 = sphi 0, %s94
    %s98 = sphi 0, %s97
    %s114 = sphi 0, %s98
    %s120 = sphi 0, %s122
    %s123 = sphi 0, %s120
    %s124 = sphi 0, %s123
    %s140 = sphi 0, %s124
    %s146 = sphi 0, %s148
    %s149 = sphi 0, %s146
    %s150 = sphi 0, %s149
    %s166 = sphi 0, %s150
    %s172 = sphi 0, %s174
    %s175 = sphi 0, %s172
    %s176 = sphi 0, %s175
    %s192 = sphi 0, %s176
    %s198 = sphi 0, %s200
    %s201 = sphi 0, %s198
    %s202 = sphi 0, %s201
    %s218 = sphi 0, %s202
    %s224 = sphi 0, %s226
    %s227 = sphi 0, %s224
    %s228 = sphi 0, %s227
    %s244 = sphi 0, %s228
    %s250 = sphi 0, %s252
    %s253 = sphi 0, %s250
    %s254 = sphi 0, %s253
    %s270 = sphi 0, %s254
    %s276 = sphi 0, %s278
    %s279 = sphi 0, %s276
    %s280 = sphi 0, %s279
    %s296 = sphi 0, %s280
    %s302 = sphi 0, %s304
    %s305 = sphi 0, %s302
    %s306 = sphi 0, %s305
    %s322 = sphi 0, %s306
    %s328 = sphi 0, %s330
    %s331 = sphi 0, %s328
    %s332 = sphi 0, %s331
    %s348 = sphi 0, %s332
    %s352 = sphi 0, %s352
    %s354 = sphi 0, %s352
    %s355 = sphi 0, %s354
    %s369 = sphi 0, %s355
    %s373 = sphi 0, %s373
    %s375 = sphi 0, %s373
    %s376 = sphi 0, %s375
    %s390 = sphi 0, %s376
    %s396 = sphi 0, %s398
    %s399 = sphi 0, %s396
    %s400 = sphi 0, %s399
    %s416 = sphi 0, %s400
  $region4: #{vq_sparse_diffusion_forward.1} parent=0 // loop_header_branch
    %23 = sbr.rel (%p21) target = $region8
  $region5: #{vq_sparse_diffusion_forward.1} parent=0 // loop_body
    %s25 = ssub.s32 %s20, 1
    %s26 = ssub.s32 %s20, 2
    %s33 = sadd.s32 1, %s28
    %p34 = scmp.ge.s32.totalorder %s33, 2
    %s35 = scalar_select %p34, 0, %s33
    %s36 = sadd.s32 1, %s27
    %s37 = scalar_select %p34, %s36, %s27
    %p38 = scmp.ge.s32.totalorder %s37, 1
    %s39 = scalar_select %p38, 0, %s37
    %s40 = ssub.s32 %s27, %s39
    %p41 = scmp.eq.s32.totalorder %s40, 0
    %s43 = sadd.s32 %s42, 1
    %s44 = scalar_select %p41, %s42, %s43
    %p47 = pneg %p41
    %p48 = scmp.eq.s32.totalorder %s20, 1
    %p49 = por %p47, %p48
    %p50 = scmp.ne.s32.totalorder %s42, %s45
    %p51 = scmp.eq.s32.totalorder %s20, 0
    %p52 = por %p50, %p51
    %p53 = scmp.ne.s32.totalorder %s42, %s45
    %p54 = scmp.eq.s32.totalorder %s25, 1
    %p55 = por %p53, %p54
    %p56 = scmp.ne.s32.totalorder %s45, %s46
    %p57 = scmp.eq.s32.totalorder %s25, 0
    %p58 = por %p56, %p57
    %p59 = scmp.ne.s32.totalorder %s45, %s46
    %p60 = scmp.eq.s32.totalorder %s26, 1
    %p61 = por %p59, %p60
    %p63 = scmp.ne.s32.totalorder %s46, %s62
    %p64 = scmp.eq.s32.totalorder %s26, 0
    %p65 = por %p63, %p64
    %s66 = ssub.s32 %s28, %s35
    %p67 = scmp.eq.s32.totalorder %s66, 0
    %s69 = sadd.s32 %s68, 1
    %s70 = scalar_select %p67, %s68, %s69
    %p73 = pneg %p67
    %p74 = scmp.eq.s32.totalorder %s20, 1
    %p75 = por %p73, %p74
    %p76 = scmp.ne.s32.totalorder %s68, %s71
    %p77 = scmp.eq.s32.totalorder %s20, 0
    %p78 = por %p76, %p77
    %p79 = scmp.ne.s32.totalorder %s68, %s71
    %p80 = scmp.eq.s32.totalorder %s25, 1
    %p81 = por %p79, %p80
    %p82 = scmp.ne.s32.totalorder %s71, %s72
    %p83 = scmp.eq.s32.totalorder %s25, 0
    %p84 = por %p82, %p83
    %p85 = scmp.ne.s32.totalorder %s71, %s72
    %p86 = scmp.eq.s32.totalorder %s26, 1
    %p87 = por %p85, %p86
    %p89 = scmp.ne.s32.totalorder %s72, %s88
    %p90 = scmp.eq.s32.totalorder %s26, 0
    %p91 = por %p89, %p90
    %s92 = ssub.s32 %s28, %s35
    %p93 = scmp.eq.s32.totalorder %s92, 0
    %s95 = sadd.s32 %s94, 1
    %s96 = scalar_select %p93, %s94, %s95
    %p99 = pneg %p93
    %p100 = scmp.eq.s32.totalorder %s20, 1
    %p101 = por %p99, %p100
    %p102 = scmp.ne.s32.totalorder %s94, %s97
    %p103 = scmp.eq.s32.totalorder %s20, 0
    %p104 = por %p102, %p103
    %p105 = scmp.ne.s32.totalorder %s94, %s97
    %p106 = scmp.eq.s32.totalorder %s25, 1
    %p107 = por %p105, %p106
    %p108 = scmp.ne.s32.totalorder %s97, %s98
    %p109 = scmp.eq.s32.totalorder %s25, 0
    %p110 = por %p108, %p109
    %p111 = scmp.ne.s32.totalorder %s97, %s98
    %p112 = scmp.eq.s32.totalorder %s26, 1
    %p113 = por %p111, %p112
    %p115 = scmp.ne.s32.totalorder %s98, %s114
    %p116 = scmp.eq.s32.totalorder %s26, 0
    %p117 = por %p115, %p116
    %s118 = ssub.s32 %s28, %s35
    %p119 = scmp.eq.s32.totalorder %s118, 0
    %s121 = sadd.s32 %s120, 1
    %s122 = scalar_select %p119, %s120, %s121
    %p125 = pneg %p119
    %p126 = scmp.eq.s32.totalorder %s20, 1
    %p127 = por %p125, %p126
    %p128 = scmp.ne.s32.totalorder %s120, %s123
    %p129 = scmp.eq.s32.totalorder %s20, 0
    %p130 = por %p128, %p129
    %p131 = scmp.ne.s32.totalorder %s120, %s123
    %p132 = scmp.eq.s32.totalorder %s25, 1
    %p133 = por %p131, %p132
    %p134 = scmp.ne.s32.totalorder %s123, %s124
    %p135 = scmp.eq.s32.totalorder %s25, 0
    %p136 = por %p134, %p135
    %p137 = scmp.ne.s32.totalorder %s123, %s124
    %p138 = scmp.eq.s32.totalorder %s26, 1
    %p139 = por %p137, %p138
    %p141 = scmp.ne.s32.totalorder %s124, %s140
    %p142 = scmp.eq.s32.totalorder %s26, 0
    %p143 = por %p141, %p142
    %s144 = ssub.s32 %s28, %s35
    %p145 = scmp.eq.s32.totalorder %s144, 0
    %s147 = sadd.s32 %s146, 1
    %s148 = scalar_select %p145, %s146, %s147
    %p151 = pneg %p145
    %p152 = scmp.eq.s32.totalorder %s20, 1
    %p153 = por %p151, %p152
    %p154 = scmp.ne.s32.totalorder %s146, %s149
    %p155 = scmp.eq.s32.totalorder %s20, 0
    %p156 = por %p154, %p155
    %p157 = scmp.ne.s32.totalorder %s146, %s149
    %p158 = scmp.eq.s32.totalorder %s25, 1
    %p159 = por %p157, %p158
    %p160 = scmp.ne.s32.totalorder %s149, %s150
    %p161 = scmp.eq.s32.totalorder %s25, 0
    %p162 = por %p160, %p161
    %p163 = scmp.ne.s32.totalorder %s149, %s150
    %p164 = scmp.eq.s32.totalorder %s26, 1
    %p165 = por %p163, %p164
    %p167 = scmp.ne.s32.totalorder %s150, %s166
    %p168 = scmp.eq.s32.totalorder %s26, 0
    %p169 = por %p167, %p168
    %s170 = ssub.s32 %s28, %s35
    %p171 = scmp.eq.s32.totalorder %s170, 0
    %s173 = sadd.s32 %s172, 1
    %s174 = scalar_select %p171, %s172, %s173
    %p177 = pneg %p171
    %p178 = scmp.eq.s32.totalorder %s20, 1
    %p179 = por %p177, %p178
    %p180 = scmp.ne.s32.totalorder %s172, %s175
    %p181 = scmp.eq.s32.totalorder %s20, 0
    %p182 = por %p180, %p181
    %p183 = scmp.ne.s32.totalorder %s172, %s175
    %p184 = scmp.eq.s32.totalorder %s25, 1
    %p185 = por %p183, %p184
    %p186 = scmp.ne.s32.totalorder %s175, %s176
    %p187 = scmp.eq.s32.totalorder %s25, 0
    %p188 = por %p186, %p187
    %p189 = scmp.ne.s32.totalorder %s175, %s176
    %p190 = scmp.eq.s32.totalorder %s26, 1
    %p191 = por %p189, %p190
    %p193 = scmp.ne.s32.totalorder %s176, %s192
    %p194 = scmp.eq.s32.totalorder %s26, 0
    %p195 = por %p193, %p194
    %s196 = ssub.s32 %s28, %s35
    %p197 = scmp.eq.s32.totalorder %s196, 0
    %s199 = sadd.s32 %s198, 1
    %s200 = scalar_select %p197, %s198, %s199
    %p203 = pneg %p197
    %p204 = scmp.eq.s32.totalorder %s20, 1
    %p205 = por %p203, %p204
    %p206 = scmp.ne.s32.totalorder %s198, %s201
    %p207 = scmp.eq.s32.totalorder %s20, 0
    %p208 = por %p206, %p207
    %p209 = scmp.ne.s32.totalorder %s198, %s201
    %p210 = scmp.eq.s32.totalorder %s25, 1
    %p211 = por %p209, %p210
    %p212 = scmp.ne.s32.totalorder %s201, %s202
    %p213 = scmp.eq.s32.totalorder %s25, 0
    %p214 = por %p212, %p213
    %p215 = scmp.ne.s32.totalorder %s201, %s202
    %p216 = scmp.eq.s32.totalorder %s26, 1
    %p217 = por %p215, %p216
    %p219 = scmp.ne.s32.totalorder %s202, %s218
    %p220 = scmp.eq.s32.totalorder %s26, 0
    %p221 = por %p219, %p220
    %s222 = ssub.s32 %s28, %s35
    %p223 = scmp.eq.s32.totalorder %s222, 0
    %s225 = sadd.s32 %s224, 1
    %s226 = scalar_select %p223, %s224, %s225
    %p229 = pneg %p223
    %p230 = scmp.eq.s32.totalorder %s20, 1
    %p231 = por %p229, %p230
    %p232 = scmp.ne.s32.totalorder %s224, %s227
    %p233 = scmp.eq.s32.totalorder %s20, 0
    %p234 = por %p232, %p233
    %p235 = scmp.ne.s32.totalorder %s224, %s227
    %p236 = scmp.eq.s32.totalorder %s25, 1
    %p237 = por %p235, %p236
    %p238 = scmp.ne.s32.totalorder %s227, %s228
    %p239 = scmp.eq.s32.totalorder %s25, 0
    %p240 = por %p238, %p239
    %p241 = scmp.ne.s32.totalorder %s227, %s228
    %p242 = scmp.eq.s32.totalorder %s26, 1
    %p243 = por %p241, %p242
    %p245 = scmp.ne.s32.totalorder %s228, %s244
    %p246 = scmp.eq.s32.totalorder %s26, 0
    %p247 = por %p245, %p246
    %s248 = ssub.s32 %s28, %s35
    %p249 = scmp.eq.s32.totalorder %s248, 0
    %s251 = sadd.s32 %s250, 1
    %s252 = scalar_select %p249, %s250, %s251
    %p255 = pneg %p249
    %p256 = scmp.eq.s32.totalorder %s20, 1
    %p257 = por %p255, %p256
    %p258 = scmp.ne.s32.totalorder %s250, %s253
    %p259 = scmp.eq.s32.totalorder %s20, 0
    %p260 = por %p258, %p259
    %p261 = scmp.ne.s32.totalorder %s250, %s253
    %p262 = scmp.eq.s32.totalorder %s25, 1
    %p263 = por %p261, %p262
    %p264 = scmp.ne.s32.totalorder %s253, %s254
    %p265 = scmp.eq.s32.totalorder %s25, 0
    %p266 = por %p264, %p265
    %p267 = scmp.ne.s32.totalorder %s253, %s254
    %p268 = scmp.eq.s32.totalorder %s26, 1
    %p269 = por %p267, %p268
    %p271 = scmp.ne.s32.totalorder %s254, %s270
    %p272 = scmp.eq.s32.totalorder %s26, 0
    %p273 = por %p271, %p272
    %s274 = ssub.s32 %s28, %s35
    %p275 = scmp.eq.s32.totalorder %s274, 0
    %s277 = sadd.s32 %s276, 1
    %s278 = scalar_select %p275, %s276, %s277
    %p281 = pneg %p275
    %p282 = scmp.eq.s32.totalorder %s20, 1
    %p283 = por %p281, %p282
    %p284 = scmp.ne.s32.totalorder %s276, %s279
    %p285 = scmp.eq.s32.totalorder %s20, 0
    %p286 = por %p284, %p285
    %p287 = scmp.ne.s32.totalorder %s276, %s279
    %p288 = scmp.eq.s32.totalorder %s25, 1
    %p289 = por %p287, %p288
    %p290 = scmp.ne.s32.totalorder %s279, %s280
    %p291 = scmp.eq.s32.totalorder %s25, 0
    %p292 = por %p290, %p291
    %p293 = scmp.ne.s32.totalorder %s279, %s280
    %p294 = scmp.eq.s32.totalorder %s26, 1
    %p295 = por %p293, %p294
    %p297 = scmp.ne.s32.totalorder %s280, %s296
    %p298 = scmp.eq.s32.totalorder %s26, 0
    %p299 = por %p297, %p298
    %s300 = ssub.s32 %s28, %s35
    %p301 = scmp.eq.s32.totalorder %s300, 0
    %s303 = sadd.s32 %s302, 1
    %s304 = scalar_select %p301, %s302, %s303
    %p307 = pneg %p301
    %p308 = scmp.eq.s32.totalorder %s20, 1
    %p309 = por %p307, %p308
    %p310 = scmp.ne.s32.totalorder %s302, %s305
    %p311 = scmp.eq.s32.totalorder %s20, 0
    %p312 = por %p310, %p311
    %p313 = scmp.ne.s32.totalorder %s302, %s305
    %p314 = scmp.eq.s32.totalorder %s25, 1
    %p315 = por %p313, %p314
    %p316 = scmp.ne.s32.totalorder %s305, %s306
    %p317 = scmp.eq.s32.totalorder %s25, 0
    %p318 = por %p316, %p317
    %p319 = scmp.ne.s32.totalorder %s305, %s306
    %p320 = scmp.eq.s32.totalorder %s26, 1
    %p321 = por %p319, %p320
    %p323 = scmp.ne.s32.totalorder %s306, %s322
    %p324 = scmp.eq.s32.totalorder %s26, 0
    %p325 = por %p323, %p324
    %s326 = ssub.s32 %s28, %s35
    %p327 = scmp.eq.s32.totalorder %s326, 0
    %s329 = sadd.s32 %s328, 1
    %s330 = scalar_select %p327, %s328, %s329
    %p333 = pneg %p327
    %p334 = scmp.eq.s32.totalorder %s20, 1
    %p335 = por %p333, %p334
    %p336 = scmp.ne.s32.totalorder %s328, %s331
    %p337 = scmp.eq.s32.totalorder %s20, 0
    %p338 = por %p336, %p337
    %p339 = scmp.ne.s32.totalorder %s328, %s331
    %p340 = scmp.eq.s32.totalorder %s25, 1
    %p341 = por %p339, %p340
    %p342 = scmp.ne.s32.totalorder %s331, %s332
    %p343 = scmp.eq.s32.totalorder %s25, 0
    %p344 = por %p342, %p343
    %p345 = scmp.ne.s32.totalorder %s331, %s332
    %p346 = scmp.eq.s32.totalorder %s26, 1
    %p347 = por %p345, %p346
    %p349 = scmp.ne.s32.totalorder %s332, %s348
    %p350 = scmp.eq.s32.totalorder %s26, 0
    %p351 = por %p349, %p350
    %s353 = sadd.s32 %s352, 1
    %p356 = scmp.eq.s32.totalorder %s20, 1
    %p357 = scmp.ne.s32.totalorder %s352, %s354
    %p358 = scmp.eq.s32.totalorder %s20, 0
    %p359 = por %p357, %p358
    %p360 = scmp.ne.s32.totalorder %s352, %s354
    %p361 = scmp.eq.s32.totalorder %s25, 1
    %p362 = por %p360, %p361
    %p363 = scmp.ne.s32.totalorder %s354, %s355
    %p364 = scmp.eq.s32.totalorder %s25, 0
    %p365 = por %p363, %p364
    %p366 = scmp.ne.s32.totalorder %s354, %s355
    %p367 = scmp.eq.s32.totalorder %s26, 1
    %p368 = por %p366, %p367
    %p370 = scmp.ne.s32.totalorder %s355, %s369
    %p371 = scmp.eq.s32.totalorder %s26, 0
    %p372 = por %p370, %p371
    %s374 = sadd.s32 %s373, 1
    %p377 = scmp.eq.s32.totalorder %s20, 1
    %p378 = scmp.ne.s32.totalorder %s373, %s375
    %p379 = scmp.eq.s32.totalorder %s20, 0
    %p380 = por %p378, %p379
    %p381 = scmp.ne.s32.totalorder %s373, %s375
    %p382 = scmp.eq.s32.totalorder %s25, 1
    %p383 = por %p381, %p382
    %p384 = scmp.ne.s32.totalorder %s375, %s376
    %p385 = scmp.eq.s32.totalorder %s25, 0
    %p386 = por %p384, %p385
    %p387 = scmp.ne.s32.totalorder %s375, %s376
    %p388 = scmp.eq.s32.totalorder %s26, 1
    %p389 = por %p387, %p388
    %p391 = scmp.ne.s32.totalorder %s376, %s390
    %p392 = scmp.eq.s32.totalorder %s26, 0
    %p393 = por %p391, %p392
    %s394 = ssub.s32 %s27, %s39
    %p395 = scmp.eq.s32.totalorder %s394, 0
    %s397 = sadd.s32 %s396, 1
    %s398 = scalar_select %p395, %s396, %s397
    %p401 = pneg %p395
    %p402 = scmp.eq.s32.totalorder %s20, 1
    %p403 = por %p401, %p402
    %p404 = scmp.ne.s32.totalorder %s396, %s399
    %p405 = scmp.eq.s32.totalorder %s20, 0
    %p406 = por %p404, %p405
    %p407 = scmp.ne.s32.totalorder %s396, %s399
    %p408 = scmp.eq.s32.totalorder %s25, 1
    %p409 = por %p407, %p408
    %p410 = scmp.ne.s32.totalorder %s399, %s400
    %p411 = scmp.eq.s32.totalorder %s25, 0
    %p412 = por %p410, %p411
    %p413 = scmp.ne.s32.totalorder %s399, %s400
    %p414 = scmp.eq.s32.totalorder %s26, 1
    %p415 = por %p413, %p414
    %p417 = scmp.ne.s32.totalorder %s400, %s416
    %p418 = scmp.eq.s32.totalorder %s26, 0
    %p419 = por %p417, %p418
    %p420 = scmp.le.s32.totalorder 1, %s20
    %p421 = scmp.lt.s32.totalorder %s20, 3
    %p422 = pnand %p420, %p421
    %p423 = pneg %p422
    // Predicated region
    $region9: #{vq_sparse_diffusion_forward.1} parent=5 // pred_check
      _
    $region10: #{vq_sparse_diffusion_forward.1} parent=5 // pred_check_branch
      %425 = sbr.rel (%p422) target = $region12
    $region11: #{vq_sparse_diffusion_forward.1} parent=5 // pred_region
      %s426 = ssub.s32 %s20, 1
      // Predicated region
      $region13: #{vq_sparse_diffusion_forward.1} parent=11 // pred_check
        %p427 = pneg %p58
      $region14: #{vq_sparse_diffusion_forward.1} parent=11 // pred_check_branch
        %429 = sbr.rel (%p427) target = $region16
      $region15: #{vq_sparse_diffusion_forward.1} parent=11 // pred_region
        %s430 = smul.u32 4, %s29
        %p431 = scmp.lt.s32.totalorder %s430, 3
        %s432 = scalar_select %p431, %s430, 3
        %s433 = smul.addr %s432, 8
        %s434 = scalar_lea.vmem %s0, %s433
        %s435 = smul.u32 4, %s29
      $region16: #{vq_sparse_diffusion_forward.1} parent=11 // pred_fallthru
        _
      // Predicated region
      $region17: #{vq_sparse_diffusion_forward.1} parent=11 // pred_check
        %p436 = pneg %p365
      $region18: #{vq_sparse_diffusion_forward.1} parent=11 // pred_check_branch
        %438 = sbr.rel (%p436) target = $region20
      $region19: #{vq_sparse_diffusion_forward.1} parent=11 // pred_region
        _
      $region20: #{vq_sparse_diffusion_forward.1} parent=11 // pred_fallthru
        _
      // Predicated region
      $region21: #{vq_sparse_diffusion_forward.1} parent=11 // pred_check
        %p439 = pneg %p386
      $region22: #{vq_sparse_diffusion_forward.1} parent=11 // pred_check_branch
        %441 = sbr.rel (%p439) target = $region24
      $region23: #{vq_sparse_diffusion_forward.1} parent=11 // pred_region
        _
      $region24: #{vq_sparse_diffusion_forward.1} parent=11 // pred_fallthru
        _
    $region12: #{vq_sparse_diffusion_forward.1} parent=5 // pred_fallthru
      _
    %p442 = scmp.lt.s32.totalorder %s20, 2
    // Predicated region
    $region25: #{vq_sparse_diffusion_forward.1} parent=5 // pred_check
      %p443 = pneg %p442
    $region26: #{vq_sparse_diffusion_forward.1} parent=5 // pred_check_branch
      %445 = sbr.rel (%p443) target = $region28
    $region27: #{vq_sparse_diffusion_forward.1} parent=5 // pred_region
      // Predicated region
      $region29: #{vq_sparse_diffusion_forward.1} parent=27 // pred_check
        %p446 = pneg %p78
      $region30: #{vq_sparse_diffusion_forward.1} parent=27 // pred_check_branch
        %448 = sbr.rel (%p446) target = $region32
      $region31: #{vq_sparse_diffusion_forward.1} parent=27 // pred_region
        %p449 = scmp.lt.s32.totalorder %s28, 1
        %s450 = scalar_select %p449, %s28, 1
        %s451 = scalar_lea.vmem %s1, %s450
      $region32: #{vq_sparse_diffusion_forward.1} parent=27 // pred_fallthru
        _
      // Predicated region
      $region33: #{vq_sparse_diffusion_forward.1} parent=27 // pred_check
        %p452 = pneg %p104
      $region34: #{vq_sparse_diffusion_forward.1} parent=27 // pred_check_branch
        %454 = sbr.rel (%p452) target = $region36
      $region35: #{vq_sparse_diffusion_forward.1} parent=27 // pred_region
        %p455 = scmp.lt.s32.totalorder %s28, 1
        %s456 = scalar_select %p455, %s28, 1
        %s457 = scalar_lea.vmem %s2, %s456
      $region36: #{vq_sparse_diffusion_forward.1} parent=27 // pred_fallthru
        _
      // Predicated region
      $region37: #{vq_sparse_diffusion_forward.1} parent=27 // pred_check
        %p458 = pneg %p130
      $region38: #{vq_sparse_diffusion_forward.1} parent=27 // pred_check_branch
        %460 = sbr.rel (%p458) target = $region40
      $region39: #{vq_sparse_diffusion_forward.1} parent=27 // pred_region
        %p461 = scmp.lt.s32.totalorder %s28, 1
        %s462 = scalar_select %p461, %s28, 1
        %s463 = smul.addr %s462, 4
        %s464 = smul.addr %s463, 8
        %s465 = scalar_lea.vmem %s3, %s464
      $region40: #{vq_sparse_diffusion_forward.1} parent=27 // pred_fallthru
        _
      // Predicated region
      $region41: #{vq_sparse_diffusion_forward.1} parent=27 // pred_check
        %p466 = pneg %p156
      $region42: #{vq_sparse_diffusion_forward.1} parent=27 // pred_check_branch
        %468 = sbr.rel (%p466) target = $region44
      $region43: #{vq_sparse_diffusion_forward.1} parent=27 // pred_region
        %p469 = scmp.lt.s32.totalorder %s28, 1
        %s470 = scalar_select %p469, %s28, 1
        %s471 = smul.addr %s470, 4
        %s472 = smul.addr %s471, 8
        %s473 = scalar_lea.vmem %s4, %s472
      $region44: #{vq_sparse_diffusion_forward.1} parent=27 // pred_fallthru
        _
      // Predicated region
      $region45: #{vq_sparse_diffusion_forward.1} parent=27 // pred_check
        %p474 = pneg %p182
      $region46: #{vq_sparse_diffusion_forward.1} parent=27 // pred_check_branch
        %476 = sbr.rel (%p474) target = $region48
      $region47: #{vq_sparse_diffusion_forward.1} parent=27 // pred_region
        %p477 = scmp.lt.s32.totalorder %s28, 1
        %s478 = scalar_select %p477, %s28, 1
        %s479 = scalar_lea.vmem %s5, %s478
      $region48: #{vq_sparse_diffusion_forward.1} parent=27 // pred_fallthru
        _
      // Predicated region
      $region49: #{vq_sparse_diffusion_forward.1} parent=27 // pred_check
        %p480 = pneg %p208
      $region50: #{vq_sparse_diffusion_forward.1} parent=27 // pred_check_branch
        %482 = sbr.rel (%p480) target = $region52
      $region51: #{vq_sparse_diffusion_forward.1} parent=27 // pred_region
        %p483 = scmp.lt.s32.totalorder %s28, 1
        %s484 = scalar_select %p483, %s28, 1
        %s485 = scalar_lea.vmem %s6, %s484
      $region52: #{vq_sparse_diffusion_forward.1} parent=27 // pred_fallthru
        _
      // Predicated region
      $region53: #{vq_sparse_diffusion_forward.1} parent=27 // pred_check
        %p486 = pneg %p234
      $region54: #{vq_sparse_diffusion_forward.1} parent=27 // pred_check_branch
        %488 = sbr.rel (%p486) target = $region56
      $region55: #{vq_sparse_diffusion_forward.1} parent=27 // pred_region
        %p489 = scmp.lt.s32.totalorder %s28, 1
        %s490 = scalar_select %p489, %s28, 1
        %s491 = scalar_lea.vmem %s7, %s490
      $region56: #{vq_sparse_diffusion_forward.1} parent=27 // pred_fallthru
        _
      // Predicated region
      $region57: #{vq_sparse_diffusion_forward.1} parent=27 // pred_check
        %p492 = pneg %p260
      $region58: #{vq_sparse_diffusion_forward.1} parent=27 // pred_check_branch
        %494 = sbr.rel (%p492) target = $region60
      $region59: #{vq_sparse_diffusion_forward.1} parent=27 // pred_region
        %p495 = scmp.lt.s32.totalorder %s28, 1
        %s496 = scalar_select %p495, %s28, 1
        %s497 = smul.addr %s496, 4
        %s498 = smul.addr %s497, 8
        %s499 = scalar_lea.vmem %s8, %s498
      $region60: #{vq_sparse_diffusion_forward.1} parent=27 // pred_fallthru
        _
      // Predicated region
      $region61: #{vq_sparse_diffusion_forward.1} parent=27 // pred_check
        %p500 = pneg %p286
      $region62: #{vq_sparse_diffusion_forward.1} parent=27 // pred_check_branch
        %502 = sbr.rel (%p500) target = $region64
      $region63: #{vq_sparse_diffusion_forward.1} parent=27 // pred_region
        %p503 = scmp.lt.s32.totalorder %s28, 1
        %s504 = scalar_select %p503, %s28, 1
        %s505 = scalar_lea.vmem %s9, %s504
      $region64: #{vq_sparse_diffusion_forward.1} parent=27 // pred_fallthru
        _
      // Predicated region
      $region65: #{vq_sparse_diffusion_forward.1} parent=27 // pred_check
        %p506 = pneg %p312
      $region66: #{vq_sparse_diffusion_forward.1} parent=27 // pred_check_branch
        %508 = sbr.rel (%p506) target = $region68
      $region67: #{vq_sparse_diffusion_forward.1} parent=27 // pred_region
        %p509 = scmp.lt.s32.totalorder %s28, 1
        %s510 = scalar_select %p509, %s28, 1
        %s511 = smul.addr %s510, 8
        %s512 = smul.addr %s511, 8
        %s513 = scalar_lea.vmem %s10, %s512
      $region68: #{vq_sparse_diffusion_forward.1} parent=27 // pred_fallthru
        _
      // Predicated region
      $region69: #{vq_sparse_diffusion_forward.1} parent=27 // pred_check
        %p514 = pneg %p338
      $region70: #{vq_sparse_diffusion_forward.1} parent=27 // pred_check_branch
        %516 = sbr.rel (%p514) target = $region72
      $region71: #{vq_sparse_diffusion_forward.1} parent=27 // pred_region
        %p517 = scmp.lt.s32.totalorder %s28, 1
        %s518 = scalar_select %p517, %s28, 1
        %s519 = scalar_lea.vmem %s11, %s518
      $region72: #{vq_sparse_diffusion_forward.1} parent=27 // pred_fallthru
        _
    $region28: #{vq_sparse_diffusion_forward.1} parent=5 // pred_fallthru
      _
    %p520 = scmp.le.s32.totalorder 1, %s20
    %p521 = scmp.lt.s32.totalorder %s20, 3
    %p522 = pnand %p520, %p521
    %p523 = pneg %p522
    // Predicated region
    $region73: #{vq_sparse_diffusion_forward.1} parent=5 // pred_check
      _
    $region74: #{vq_sparse_diffusion_forward.1} parent=5 // pred_check_branch
      %525 = sbr.rel (%p522) target = $region76
    $region75: #{vq_sparse_diffusion_forward.1} parent=5 // pred_region
      %s526 = ssub.s32 %s20, 1
      %s527 = smul.u32 4, %s29
      %p528 = scmp.lt.s32.totalorder %s527, 3
      %s529 = scalar_select %p528, %s527, 3
      %s530 = smul.addr %s529, 8
      %s531 = scalar_lea.vmem %s0, %s530
      %p532 = pneg %p58
      %p533 = pneg %p55
      %p534 = scmp.lt.s32.totalorder %s30, 1
      %s535 = scalar_select %p534, %s30, 1
      %s536 = scalar_lea.vmem %s1, %s535
      %p537 = pneg %p84
      %p538 = pneg %p81
      %p539 = scmp.lt.s32.totalorder %s30, 1
      %s540 = scalar_select %p539, %s30, 1
      %s541 = scalar_lea.vmem %s2, %s540
      %p542 = pneg %p110
      %p543 = pneg %p107
      %p544 = scmp.lt.s32.totalorder %s30, 1
      %s545 = scalar_select %p544, %s30, 1
      %s546 = smul.addr %s545, 4
      %s547 = smul.addr %s546, 8
      %s548 = scalar_lea.vmem %s3, %s547
      %p549 = pneg %p136
      %p550 = pneg %p133
      %p551 = scmp.lt.s32.totalorder %s30, 1
      %s552 = scalar_select %p551, %s30, 1
      %s553 = smul.addr %s552, 4
      %s554 = smul.addr %s553, 8
      %s555 = scalar_lea.vmem %s4, %s554
      %p556 = pneg %p162
      %p557 = pneg %p159
      %p558 = scmp.lt.s32.totalorder %s30, 1
      %s559 = scalar_select %p558, %s30, 1
      %s560 = scalar_lea.vmem %s5, %s559
      %p561 = pneg %p188
      %p562 = pneg %p185
      %p563 = scmp.lt.s32.totalorder %s30, 1
      %s564 = scalar_select %p563, %s30, 1
      %s565 = scalar_lea.vmem %s6, %s564
      %p566 = pneg %p214
      %p567 = pneg %p211
      %p568 = scmp.lt.s32.totalorder %s30, 1
      %s569 = scalar_select %p568, %s30, 1
      %s570 = scalar_lea.vmem %s7, %s569
      %p571 = pneg %p240
      %p572 = pneg %p237
      %p573 = scmp.lt.s32.totalorder %s30, 1
      %s574 = scalar_select %p573, %s30, 1
      %s575 = smul.addr %s574, 4
      %s576 = smul.addr %s575, 8
      %s577 = scalar_lea.vmem %s8, %s576
      %p578 = pneg %p266
      %p579 = pneg %p263
      %p580 = scmp.lt.s32.totalorder %s30, 1
      %s581 = scalar_select %p580, %s30, 1
      %s582 = scalar_lea.vmem %s9, %s581
      %p583 = pneg %p292
      %p584 = pneg %p289
      %p585 = scmp.lt.s32.totalorder %s30, 1
      %s586 = scalar_select %p585, %s30, 1
      %s587 = smul.addr %s586, 8
      %s588 = smul.addr %s587, 8
      %s589 = scalar_lea.vmem %s10, %s588
      %p590 = pneg %p318
      %p591 = pneg %p315
      %p592 = scmp.lt.s32.totalorder %s30, 1
      %s593 = scalar_select %p592, %s30, 1
      %s594 = scalar_lea.vmem %s11, %s593
      %p595 = pneg %p344
      %p596 = pneg %p341
      %p597 = pneg %p365
      %p598 = pneg %p362
      %p599 = pneg %p386
      %p600 = pneg %p383
      %p601 = pneg %p412
      %p602 = pneg %p409
      %s603 = smul.u32 4, %s29
      %p604 = scmp.lt.s32.totalorder %s603, 3
      %s605 = scalar_select %p604, %s603, 3
      %s606 = smul.addr %s605, 8
      %s607 = scalar_lea.vmem %s14, %s606
      %s608 = smul.u32 4, %s29
      %p609 = scmp.lt.s32.totalorder %s608, 3
      %s610 = scalar_select %p609, %s608, 3
      %s611 = smul.addr %s610, 8
      %s612 = scalar_lea.vmem %s0, %s611
      %s613 = smul.u32 4, %s29
      %p614 = scmp.lt.s32.totalorder %s30, 1
      %s615 = scalar_select %p614, %s30, 1
      %s616 = scalar_lea.vmem %s1, %s615
      %p617 = scmp.lt.s32.totalorder %s30, 1
      %s618 = scalar_select %p617, %s30, 1
      %s619 = scalar_lea.vmem %s2, %s618
      %p620 = scmp.lt.s32.totalorder %s30, 1
      %s621 = scalar_select %p620, %s30, 1
      %s622 = smul.addr %s621, 4
      %s623 = smul.addr %s622, 8
      %s624 = scalar_lea.vmem %s3, %s623
      %p625 = scmp.lt.s32.totalorder %s30, 1
      %s626 = scalar_select %p625, %s30, 1
      %s627 = smul.addr %s626, 4
      %s628 = smul.addr %s627, 8
      %s629 = scalar_lea.vmem %s4, %s628
      %p630 = scmp.lt.s32.totalorder %s30, 1
      %s631 = scalar_select %p630, %s30, 1
      %s632 = scalar_lea.vmem %s5, %s631
      %p633 = scmp.lt.s32.totalorder %s30, 1
      %s634 = scalar_select %p633, %s30, 1
      %s635 = scalar_lea.vmem %s6, %s634
      %p636 = scmp.lt.s32.totalorder %s30, 1
      %s637 = scalar_select %p636, %s30, 1
      %s638 = scalar_lea.vmem %s7, %s637
      %p639 = scmp.lt.s32.totalorder %s30, 1
      %s640 = scalar_select %p639, %s30, 1
      %s641 = smul.addr %s640, 4
      %s642 = smul.addr %s641, 8
      %s643 = scalar_lea.vmem %s8, %s642
      %p644 = scmp.lt.s32.totalorder %s30, 1
      %s645 = scalar_select %p644, %s30, 1
      %s646 = scalar_lea.vmem %s9, %s645
      %p647 = scmp.lt.s32.totalorder %s30, 1
      %s648 = scalar_select %p647, %s30, 1
      %s649 = smul.addr %s648, 8
      %s650 = smul.addr %s649, 8
      %s651 = scalar_lea.vmem %s10, %s650
      %p652 = scmp.lt.s32.totalorder %s30, 1
      %s653 = scalar_select %p652, %s30, 1
      %s654 = scalar_lea.vmem %s11, %s653
      %s655 = smul.u32 4, %s29
      %p656 = scmp.lt.s32.totalorder %s655, 3
      %s657 = scalar_select %p656, %s655, 3
      %s658 = smul.addr %s657, 8
      %s659 = scalar_lea.vmem %s14, %s658
      %s660 = smul.u32 4, %s29
      %p662 = scmp.eq.s32.totalorder %s30, 0
      // Predicated region
      $region77: #{vq_sparse_diffusion_forward.1} parent=75 // pred_check
        %p663 = pneg %p662
      $region78: #{vq_sparse_diffusion_forward.1} parent=75 // pred_check_branch
        %665 = sbr.rel (%p663) target = $region80
      $region79: #{vq_sparse_diffusion_forward.1} parent=75 // pred_region
        %v666 = vld [vmem:[%s612] sm:$0xff]
        %v667 = vld [vmem:[%s612 + $0x8] sm:$0xff]
        %v668 = vld [vmem:[%s612 + $0x10] sm:$0xff]
        %v669 = vld [vmem:[%s612 + $0x18] sm:$0xff]
        %vm670 = vcmask 261120
        %671 = vst.msk [vmem:[#allocation2] sm:$0xff] %vm670, %v666
        %672 = vst.msk [vmem:[#allocation2 + $0x8] sm:$0xff] %vm670, %v667
        %673 = vst.msk [vmem:[#allocation2 + $0x10] sm:$0xff] %vm670, %v668
        %674 = vst.msk [vmem:[#allocation2 + $0x18] sm:$0xff] %vm670, %v669
      $region80: #{vq_sparse_diffusion_forward.1} parent=75 // pred_fallthru
        _
      %v675 = vld [vmem:[#allocation2] sm:$0xff]
      %v676 = vld [vmem:[#allocation2 + $0x8] sm:$0xff]
      %v677 = vld [vmem:[#allocation2 + $0x10] sm:$0xff]
      %v678 = vld [vmem:[#allocation2 + $0x18] sm:$0xff]
      %v679 = vld [vmem:[%s616] sm:$0x1]
      %v680 = vld [vmem:[%s619] sm:$0x1]
      %vm681 = vcmask 261120
      %v682 = vsel %vm681, %v675, 0.0
      %683 = vadd.xlane.f32.xlu0 %v682
      %v684 = vpop.xlane.xlu0 %683
      %v685 = vsel %vm681, %v676, 0.0
      %686 = vadd.xlane.f32.xlu0 %v685
      %v687 = vpop.xlane.xlu0 %686
      %v688 = vsel %vm681, %v677, 0.0
      %689 = vadd.xlane.f32.xlu0 %v688
      %v690 = vpop.xlane.xlu0 %689
      %v691 = vsel %vm681, %v678, 0.0
      %692 = vadd.xlane.f32.xlu0 %v691
      %v693 = vpop.xlane.xlu0 %692
      %v694 = vrcp.pop 32.0
      %v695 = vmul.f32 %v684, %v694
      %v696 = vmul.f32 %v687, %v694
      %v697 = vmul.f32 %v690, %v694
      %v698 = vmul.f32 %v693, %v694
      %v699 = vsub.f32 %v675, %v695
      %v700 = vsub.f32 %v676, %v696
      %v701 = vsub.f32 %v677, %v697
      %v702 = vsub.f32 %v678, %v698
      %v703 = vmul.f32 %v699, %v699
      %v704 = vmul.f32 %v700, %v700
      %v705 = vmul.f32 %v701, %v701
      %v706 = vmul.f32 %v702, %v702
      %v707 = vsel %vm681, %v703, 0.0
      %708 = vadd.xlane.f32.xlu0 %v707
      %v709 = vpop.xlane.xlu0 %708
      %v710 = vsel %vm681, %v704, 0.0
      %711 = vadd.xlane.f32.xlu0 %v710
      %v712 = vpop.xlane.xlu0 %711
      %v713 = vsel %vm681, %v705, 0.0
      %714 = vadd.xlane.f32.xlu0 %v713
      %v715 = vpop.xlane.xlu0 %714
      %v716 = vsel %vm681, %v706, 0.0
      %717 = vadd.xlane.f32.xlu0 %v716
      %v718 = vpop.xlane.xlu0 %717
      %v719 = vmul.f32 %v709, %v694
      %v720 = vmul.f32 %v712, %v694
      %v721 = vmul.f32 %v715, %v694
      %v722 = vmul.f32 %v718, %v694
      %v723 = vadd.f32 %v719, 1e-05
      %v724 = vadd.f32 %v720, 1e-05
      %v725 = vadd.f32 %v721, 1e-05
      %v726 = vadd.f32 %v722, 1e-05
      %v727 = vrsqrt.pop %v723
      %v728 = vrsqrt.pop %v724
      %v729 = vrsqrt.pop %v725
      %v730 = vrsqrt.pop %v726
      %v731 = vmul.f32 %v699, %v727
      %v732 = vmul.f32 %v700, %v728
      %v733 = vmul.f32 %v701, %v729
      %v734 = vmul.f32 %v702, %v730
      %v736 = vlaneseq
      %v737 = vshrl.u32 %v736, 7
      %v738 = vsub.s32 0, %v737
      %v739 = vrot.slane %v679, %v738
      %v741 = vmul.f32 %v731, %v739
      %v742 = vmul.f32 %v732, %v739
      %v743 = vmul.f32 %v733, %v739
      %v744 = vmul.f32 %v734, %v739
      %v746 = vlaneseq
      %v747 = vshrl.u32 %v746, 7
      %v748 = vsub.s32 0, %v747
      %v749 = vrot.slane %v680, %v748
      %v751 = vadd.f32 %v741, %v749
      %v752 = vadd.f32 %v742, %v749
      %v753 = vadd.f32 %v743, %v749
      %v754 = vadd.f32 %v744, %v749
      %v755 = vpack.c.bf16 %v752, %v751
      %v756 = vpack.c.bf16 %v754, %v753
      %v757 = vld [vmem:[%s624] sm:$0xff]
      %v758 = vld [vmem:[%s624 + $0x8] sm:$0xff]
      %v759 = vld [vmem:[%s624 + $0x10] sm:$0xff]
      %v760 = vld [vmem:[%s624 + $0x18] sm:$0xff]
      %v761 = vpack.c.bf16 %v758, %v757
      %v762 = vpack.c.bf16 %v760, %v759
      %v764 = vsel %vm681, %v755, 0
      %v767 = vsel %vm681, %v756, 0
      %769 = vmatprep.subr.bf16.mxu0 0
      %770 = vmatpush1.bf16.msra.mxu0 %v761
      %771 = vmatprep.subr.bf16.mxu0 0
      %772 = vmatpush1.bf16.msra.mxu0 %v762
      %773 = vmatprep.subr.bf16.mxu0 0
      %774 = vmatpush1.bf16.msra.mxu0 0
      %775 = vmatprep.subr.bf16.mxu0 0
      %776 = vmatpush1.bf16.msra.mxu0 0
      %777 = vmatprep.subr.bf16.mxu0 0
      %778 = vmatpush1.bf16.msra.mxu0 0
      %779 = vmatprep.subr.bf16.mxu0 0
      %780 = vmatpush1.bf16.msra.mxu0 0
      %781 = vmatprep.subr.bf16.mxu0 0
      %782 = vmatpush1.bf16.msra.mxu0 0
      %783 = vmatprep.subr.bf16.mxu0 0
      %784 = vmatpush1.bf16.msra.mxu0 0
      %785 = vmatprep.subr.bf16.mxu0 0
      %786 = vmatpush1.bf16.msra.mxu0 0
      %787 = vmatprep.subr.bf16.mxu0 0
      %788 = vmatpush1.bf16.msra.mxu0 0
      %789 = vmatprep.subr.bf16.mxu0 0
      %790 = vmatpush1.bf16.msra.mxu0 0
      %791 = vmatprep.subr.bf16.mxu0 0
      %792 = vmatpush1.bf16.msra.mxu0 0
      %793 = vmatprep.subr.bf16.mxu0 0
      %794 = vmatpush1.bf16.msra.mxu0 0
      %795 = vmatprep.subr.bf16.mxu0 0
      %796 = vmatpush1.bf16.msra.mxu0 0
      %797 = vmatprep.subr.bf16.mxu0 0
      %798 = vmatpush1.bf16.msra.mxu0 0
      %799 = vmatprep.subr.bf16.mxu0 0
      %800 = vmatpush1.bf16.msra.mxu0 0
      %801 = vmatprep.mubr.bf16.mxu0 0
      %802 = vmatmul.mubr.bf16.gmra.mrb[0].mxu0 %v764
      %v803 = vpop.f32.mrb[0].mxu0
      %v804 = vadd.f32 0.0, %v803
      %v805 = vpop.f32.mrb[0].mxu0
      %v806 = vpop.f32.mrb[0].mxu0
      %v807 = vadd.f32 0.0, %v806
      %v808 = vpop.f32.mrb[0].mxu0
      %809 = vmatprep.mubr.bf16.mxu0 0
      %810 = vmatmul.mubr.bf16.gmra.mrb[0].mxu0 %v767
      %v811 = vpop.f32.mrb[0].mxu0
      %v812 = vadd.f32 0.0, %v811
      %v813 = vpop.f32.mrb[0].mxu0
      %v814 = vpop.f32.mrb[0].mxu0
      %v815 = vadd.f32 0.0, %v814
      %v816 = vpop.f32.mrb[0].mxu0
      %817 = vdwg.mxu0
      %v818 = vld [vmem:[%s629] sm:$0xff]
      %v819 = vld [vmem:[%s629 + $0x8] sm:$0xff]
      %v820 = vld [vmem:[%s629 + $0x10] sm:$0xff]
      %v821 = vld [vmem:[%s629 + $0x18] sm:$0xff]
      %v822 = vpack.c.bf16 %v819, %v818
      %v823 = vpack.c.bf16 %v821, %v820
      %v824 = vpack.c.bf16 %v807, %v804
      %v825 = vpack.c.bf16 %v815, %v812
      %827 = vrot.lane.b32.xlu0 %v824, 96
      %v828 = vpop.permute.xlu0 %827
      %vm829 = vcmask 130048
      %v831 = vsel %vm829, %v824, 0
      %v834 = vsel %vm829, %v828, 0
      %836 = vmatprep.subr.bf16.mxu0 0
      %837 = vmatpush1.bf16.xpose.msra.mxu0 %v834
      %838 = vmatprep.subr.bf16.mxu0 0
      %839 = vmatpush1.bf16.xpose.msra.mxu0 0
      %840 = vmatprep.subr.bf16.mxu0 0
      %841 = vmatpush1.bf16.xpose.msra.mxu0 0
      %842 = vmatprep.subr.bf16.mxu0 0
      %843 = vmatpush1.bf16.xpose.msra.mxu0 0
      %844 = vmatprep.subr.bf16.mxu0 0
      %845 = vmatpush1.bf16.xpose.msra.mxu0 0
      %846 = vmatprep.subr.bf16.mxu0 0
      %847 = vmatpush1.bf16.xpose.msra.mxu0 0
      %848 = vmatprep.subr.bf16.mxu0 0
      %849 = vmatpush1.bf16.xpose.msra.mxu0 0
      %850 = vmatprep.subr.bf16.mxu0 0
      %851 = vmatpush1.bf16.xpose.msra.mxu0 0
      %852 = vmatprep.subr.bf16.mxu0 0
      %853 = vmatpush1.bf16.xpose.msra.mxu0 0
      %854 = vmatprep.subr.bf16.mxu0 0
      %855 = vmatpush1.bf16.xpose.msra.mxu0 0
      %856 = vmatprep.subr.bf16.mxu0 0
      %857 = vmatpush1.bf16.xpose.msra.mxu0 0
      %858 = vmatprep.subr.bf16.mxu0 0
      %859 = vmatpush1.bf16.xpose.msra.mxu0 0
      %860 = vmatprep.subr.bf16.mxu0 0
      %861 = vmatpush1.bf16.xpose.msra.mxu0 0
      %862 = vmatprep.subr.bf16.mxu0 0
      %863 = vmatpush1.bf16.xpose.msra.mxu0 0
      %864 = vmatprep.subr.bf16.mxu0 0
      %865 = vmatpush1.bf16.xpose.msra.mxu0 0
      %866 = vmatprep.subr.bf16.mxu0 0
      %867 = vmatpush1.bf16.xpose.msra.mxu0 0
      %868 = vmatprep.mubr.bf16.mxu0 0
      %869 = vmatmul.mubr.bf16.gmra.mrb[0].mxu0 %v831
      %v870 = vpop.f32.mrb[0].mxu0
      %v871 = vadd.f32 0.0, %v870
      %v872 = vpop.f32.mrb[0].mxu0
      %v873 = vpop.f32.mrb[0].mxu0
      %v874 = vadd.f32 0.0, %v873
      %v875 = vpop.f32.mrb[0].mxu0
      %876 = vdwg.mxu0
      %878 = vrot.lane.b32.xlu0 %v825, 96
      %v879 = vpop.permute.xlu0 %878
      %v881 = vsel %vm829, %v825, 0
      %v884 = vsel %vm829, %v879, 0
      %886 = vmatprep.subr.bf16.mxu0 0
      %887 = vmatpush1.bf16.xpose.msra.mxu0 %v884
      %888 = vmatprep.subr.bf16.mxu0 0
      %889 = vmatpush1.bf16.xpose.msra.mxu0 0
      %890 = vmatprep.subr.bf16.mxu0 0
      %891 = vmatpush1.bf16.xpose.msra.mxu0 0
      %892 = vmatprep.subr.bf16.mxu0 0
      %893 = vmatpush1.bf16.xpose.msra.mxu0 0
      %894 = vmatprep.subr.bf16.mxu0 0
      %895 = vmatpush1.bf16.xpose.msra.mxu0 0
      %896 = vmatprep.subr.bf16.mxu0 0
      %897 = vmatpush1.bf16.xpose.msra.mxu0 0
      %898 = vmatprep.subr.bf16.mxu0 0
      %899 = vmatpush1.bf16.xpose.msra.mxu0 0
      %900 = vmatprep.subr.bf16.mxu0 0
      %901 = vmatpush1.bf16.xpose.msra.mxu0 0
      %902 = vmatprep.subr.bf16.mxu0 0
      %903 = vmatpush1.bf16.xpose.msra.mxu0 0
      %904 = vmatprep.subr.bf16.mxu0 0
      %905 = vmatpush1.bf16.xpose.msra.mxu0 0
      %906 = vmatprep.subr.bf16.mxu0 0
      %907 = vmatpush1.bf16.xpose.msra.mxu0 0
      %908 = vmatprep.subr.bf16.mxu0 0
      %909 = vmatpush1.bf16.xpose.msra.mxu0 0
      %910 = vmatprep.subr.bf16.mxu0 0
      %911 = vmatpush1.bf16.xpose.msra.mxu0 0
      %912 = vmatprep.subr.bf16.mxu0 0
      %913 = vmatpush1.bf16.xpose.msra.mxu0 0
      %914 = vmatprep.subr.bf16.mxu0 0
      %915 = vmatpush1.bf16.xpose.msra.mxu0 0
      %916 = vmatprep.subr.bf16.mxu0 0
      %917 = vmatpush1.bf16.xpose.msra.mxu0 0
      %918 = vmatprep.mubr.bf16.mxu0 0
      %919 = vmatmul.mubr.bf16.gmra.mrb[0].mxu0 %v881
      %v920 = vpop.f32.mrb[0].mxu0
      %v921 = vadd.f32 0.0, %v920
      %v922 = vpop.f32.mrb[0].mxu0
      %v923 = vpop.f32.mrb[0].mxu0
      %v924 = vadd.f32 0.0, %v923
      %v925 = vpop.f32.mrb[0].mxu0
      %926 = vdwg.mxu0
      %v927 = vmul.f32 %v871, 0.25
      %v928 = vmul.f32 %v874, 0.25
      %v929 = vmul.f32 %v921, 0.25
      %v930 = vmul.f32 %v924, 0.25
      %v931 = vsel %vm829, %v927, -inf
      %932 = vmax.xlane.f32.xlu0 %v931
      %v933 = vpop.xlane.xlu0 %932
      %v934 = vsel %vm829, %v928, -inf
      %935 = vmax.xlane.f32.xlu0 %v934
      %v936 = vpop.xlane.xlu0 %935
      %v937 = vsel %vm829, %v929, -inf
      %938 = vmax.xlane.f32.xlu0 %v937
      %v939 = vpop.xlane.xlu0 %938
      %v940 = vsel %vm829, %v930, -inf
      %941 = vmax.xlane.f32.xlu0 %v940
      %v942 = vpop.xlane.xlu0 %941
      %v943 = vsub.f32 %v927, %v933
      %v944 = vsub.f32 %v928, %v936
      %v945 = vsub.f32 %v929, %v939
      %v946 = vsub.f32 %v930, %v942
      %v947 = vmul.f32 %v943, 1.442695
      %v948 = vpow.pop %v947
      %v949 = vmul.f32 %v944, 1.442695
      %v950 = vpow.pop %v949
      %v951 = vmul.f32 %v945, 1.442695
      %v952 = vpow.pop %v951
      %v953 = vmul.f32 %v946, 1.442695
      %v954 = vpow.pop %v953
      %v955 = vsel %vm829, %v948, 0.0
      %956 = vadd.xlane.f32.xlu0 %v955
      %v957 = vpop.xlane.xlu0 %956
      %v958 = vsel %vm829, %v950, 0.0
      %959 = vadd.xlane.f32.xlu0 %v958
      %v960 = vpop.xlane.xlu0 %959
      %v961 = vsel %vm829, %v952, 0.0
      %962 = vadd.xlane.f32.xlu0 %v961
      %v963 = vpop.xlane.xlu0 %962
      %v964 = vsel %vm829, %v954, 0.0
      %965 = vadd.xlane.f32.xlu0 %v964
      %v966 = vpop.xlane.xlu0 %965
      %v967 = vrcp.pop %v957
      %v968 = vrcp.pop %v960
      %v969 = vrcp.pop %v963
      %v970 = vrcp.pop %v966
      %v971 = vmul.f32 %v948, %v967
      %v972 = vmul.f32 %v950, %v968
      %v973 = vmul.f32 %v952, %v969
      %v974 = vmul.f32 %v954, %v970
      %v975 = vpack.c.bf16 %v972, %v971
      %v976 = vpack.c.bf16 %v974, %v973
      %977 = vrot.lane.b32.xlu0 %v824, 64
      %v978 = vpop.permute.xlu0 %977
      %v981 = vsel %vm829, %v975, 0
      %983 = vmatprep.subr.bf16.mxu0 0
      %984 = vmatpush1.bf16.msra.mxu0 %v978
      %985 = vmatprep.subr.bf16.mxu0 0
      %986 = vmatpush1.bf16.msra.mxu0 0
      %987 = vmatprep.subr.bf16.mxu0 0
      %988 = vmatpush1.bf16.msra.mxu0 0
      %989 = vmatprep.subr.bf16.mxu0 0
      %990 = vmatpush1.bf16.msra.mxu0 0
      %991 = vmatprep.subr.bf16.mxu0 0
      %992 = vmatpush1.bf16.msra.mxu0 0
      %993 = vmatprep.subr.bf16.mxu0 0
      %994 = vmatpush1.bf16.msra.mxu0 0
      %995 = vmatprep.subr.bf16.mxu0 0
      %996 = vmatpush1.bf16.msra.mxu0 0
      %997 = vmatprep.subr.bf16.mxu0 0
      %998 = vmatpush1.bf16.msra.mxu0 0
      %999 = vmatprep.subr.bf16.mxu0 0
      %1000 = vmatpush1.bf16.msra.mxu0 0
      %1001 = vmatprep.subr.bf16.mxu0 0
      %1002 = vmatpush1.bf16.msra.mxu0 0
      %1003 = vmatprep.subr.bf16.mxu0 0
      %1004 = vmatpush1.bf16.msra.mxu0 0
      %1005 = vmatprep.subr.bf16.mxu0 0
      %1006 = vmatpush1.bf16.msra.mxu0 0
      %1007 = vmatprep.subr.bf16.mxu0 0
      %1008 = vmatpush1.bf16.msra.mxu0 0
      %1009 = vmatprep.subr.bf16.mxu0 0
      %1010 = vmatpush1.bf16.msra.mxu0 0
      %1011 = vmatprep.subr.bf16.mxu0 0
      %1012 = vmatpush1.bf16.msra.mxu0 0
      %1013 = vmatprep.subr.bf16.mxu0 0
      %1014 = vmatpush1.bf16.msra.mxu0 0
      %1015 = vmatprep.mubr.bf16.mxu0 0
      %1016 = vmatmul.mubr.bf16.gmra.mrb[0].mxu0 %v981
      %v1017 = vpop.f32.mrb[0].mxu0
      %v1018 = vadd.f32 0.0, %v1017
      %v1019 = vpop.f32.mrb[0].mxu0
      %v1020 = vpop.f32.mrb[0].mxu0
      %v1021 = vadd.f32 0.0, %v1020
      %v1022 = vpop.f32.mrb[0].mxu0
      %1023 = vdwg.mxu0
      %1024 = vrot.lane.b32.xlu0 %v825, 64
      %v1025 = vpop.permute.xlu0 %1024
      %v1028 = vsel %vm829, %v976, 0
      %1030 = vmatprep.subr.bf16.mxu0 0
      %1031 = vmatpush1.bf16.msra.mxu0 %v1025
      %1032 = vmatprep.subr.bf16.mxu0 0
      %1033 = vmatpush1.bf16.msra.mxu0 0
      %1034 = vmatprep.subr.bf16.mxu0 0
      %1035 = vmatpush1.bf16.msra.mxu0 0
      %1036 = vmatprep.subr.bf16.mxu0 0
      %1037 = vmatpush1.bf16.msra.mxu0 0
      %1038 = vmatprep.subr.bf16.mxu0 0
      %1039 = vmatpush1.bf16.msra.mxu0 0
      %1040 = vmatprep.subr.bf16.mxu0 0
      %1041 = vmatpush1.bf16.msra.mxu0 0
      %1042 = vmatprep.subr.bf16.mxu0 0
      %1043 = vmatpush1.bf16.msra.mxu0 0
      %1044 = vmatprep.subr.bf16.mxu0 0
      %1045 = vmatpush1.bf16.msra.mxu0 0
      %1046 = vmatprep.subr.bf16.mxu0 0
      %1047 = vmatpush1.bf16.msra.mxu0 0
      %1048 = vmatprep.subr.bf16.mxu0 0
      %1049 = vmatpush1.bf16.msra.mxu0 0
      %1050 = vmatprep.subr.bf16.mxu0 0
      %1051 = vmatpush1.bf16.msra.mxu0 0
      %1052 = vmatprep.subr.bf16.mxu0 0
      %1053 = vmatpush1.bf16.msra.mxu0 0
      %1054 = vmatprep.subr.bf16.mxu0 0
      %1055 = vmatpush1.bf16.msra.mxu0 0
      %1056 = vmatprep.subr.bf16.mxu0 0
      %1057 = vmatpush1.bf16.msra.mxu0 0
      %1058 = vmatprep.subr.bf16.mxu0 0
      %1059 = vmatpush1.bf16.msra.mxu0 0
      %1060 = vmatprep.subr.bf16.mxu0 0
      %1061 = vmatpush1.bf16.msra.mxu0 0
      %1062 = vmatprep.mubr.bf16.mxu0 0
      %1063 = vmatmul.mubr.bf16.gmra.mrb[0].mxu0 %v1028
      %v1064 = vpop.f32.mrb[0].mxu0
      %v1065 = vadd.f32 0.0, %v1064
      %v1066 = vpop.f32.mrb[0].mxu0
      %v1067 = vpop.f32.mrb[0].mxu0
      %v1068 = vadd.f32 0.0, %v1067
      %v1069 = vpop.f32.mrb[0].mxu0
      %1070 = vdwg.mxu0
      %v1071 = vpack.c.bf16 %v1021, %v1018
      %v1072 = vpack.c.bf16 %v1068, %v1065
      %1073 = vrot.lane.b32.xlu0 %v824, 112
      %v1074 = vpop.permute.xlu0 %1073
      %1075 = vrot.lane.b32.xlu0 %v824, 80
      %v1076 = vpop.permute.xlu0 %1075
      %v1078 = vsel %vm829, %v1074, 0
      %v1081 = vsel %vm829, %v1076, 0
      %1083 = vmatprep.subr.bf16.mxu0 0
      %1084 = vmatpush1.bf16.xpose.msra.mxu0 %v1081
      %1085 = vmatprep.subr.bf16.mxu0 0
      %1086 = vmatpush1.bf16.xpose.msra.mxu0 0
      %1087 = vmatprep.subr.bf16.mxu0 0
      %1088 = vmatpush1.bf16.xpose.msra.mxu0 0
      %1089 = vmatprep.subr.bf16.mxu0 0
      %1090 = vmatpush1.bf16.xpose.msra.mxu0 0
      %1091 = vmatprep.subr.bf16.mxu0 0
      %1092 = vmatpush1.bf16.xpose.msra.mxu0 0
      %1093 = vmatprep.subr.bf16.mxu0 0
      %1094 = vmatpush1.bf16.xpose.msra.mxu0 0
      %1095 = vmatprep.subr.bf16.mxu0 0
      %1096 = vmatpush1.bf16.xpose.msra.mxu0 0
      %1097 = vmatprep.subr.bf16.mxu0 0
      %1098 = vmatpush1.bf16.xpose.msra.mxu0 0
      %1099 = vmatprep.subr.bf16.mxu0 0
      %1100 = vmatpush1.bf16.xpose.msra.mxu0 0
      %1101 = vmatprep.subr.bf16.mxu0 0
      %1102 = vmatpush1.bf16.xpose.msra.mxu0 0
      %1103 = vmatprep.subr.bf16.mxu0 0
      %1104 = vmatpush1.bf16.xpose.msra.mxu0 0
      %1105 = vmatprep.subr.bf16.mxu0 0
      %1106 = vmatpush1.bf16.xpose.msra.mxu0 0
      %1107 = vmatprep.subr.bf16.mxu0 0
      %1108 = vmatpush1.bf16.xpose.msra.mxu0 0
      %1109 = vmatprep.subr.bf16.mxu0 0
      %1110 = vmatpush1.bf16.xpose.msra.mxu0 0
      %1111 = vmatprep.subr.bf16.mxu0 0
      %1112 = vmatpush1.bf16.xpose.msra.mxu0 0
      %1113 = vmatprep.subr.bf16.mxu0 0
      %1114 = vmatpush1.bf16.xpose.msra.mxu0 0
      %1115 = vmatprep.mubr.bf16.mxu0 0
      %1116 = vmatmul.mubr.bf16.gmra.mrb[0].mxu0 %v1078
      %v1117 = vpop.f32.mrb[0].mxu0
      %v1118 = vadd.f32 0.0, %v1117
      %v1119 = vpop.f32.mrb[0].mxu0
      %v1120 = vpop.f32.mrb[0].mxu0
      %v1121 = vadd.f32 0.0, %v1120
      %v1122 = vpop.f32.mrb[0].mxu0
      %1123 = vdwg.mxu0
      %1124 = vrot.lane.b32.xlu0 %v825, 112
      %v1125 = vpop.permute.xlu0 %1124
      %1126 = vrot.lane.b32.xlu0 %v825, 80
      %v1127 = vpop.permute.xlu0 %1126
      %v1129 = vsel %vm829, %v1125, 0
      %v1132 = vsel %vm829, %v1127, 0
      %1134 = vmatprep.subr.bf16.mxu0 0
      %1135 = vmatpush1.bf16.xpose.msra.mxu0 %v1132
      %1136 = vmatprep.subr.bf16.mxu0 0
      %1137 = vmatpush1.bf16.xpose.msra.mxu0 0
      %1138 = vmatprep.subr.bf16.mxu0 0
      %1139 = vmatpush1.bf16.xpose.msra.mxu0 0
      %1140 = vmatprep.subr.bf16.mxu0 0
      %1141 = vmatpush1.bf16.xpose.msra.mxu0 0
      %1142 = vmatprep.subr.bf16.mxu0 0
      %1143 = vmatpush1.bf16.xpose.msra.mxu0 0
      %1144 = vmatprep.subr.bf16.mxu0 0
      %1145 = vmatpush1.bf16.xpose.msra.mxu0 0
      %1146 = vmatprep.subr.bf16.mxu0 0
      %1147 = vmatpush1.bf16.xpose.msra.mxu0 0
      %1148 = vmatprep.subr.bf16.mxu0 0
      %1149 = vmatpush1.bf16.xpose.msra.mxu0 0
      %1150 = vmatprep.subr.bf16.mxu0 0
      %1151 = vmatpush1.bf16.xpose.msra.mxu0 0
      %1152 = vmatprep.subr.bf16.mxu0 0
      %1153 = vmatpush1.bf16.xpose.msra.mxu0 0
      %1154 = vmatprep.subr.bf16.mxu0 0
      %1155 = vmatpush1.bf16.xpose.msra.mxu0 0
      %1156 = vmatprep.subr.bf16.mxu0 0
      %1157 = vmatpush1.bf16.xpose.msra.mxu0 0
      %1158 = vmatprep.subr.bf16.mxu0 0
      %1159 = vmatpush1.bf16.xpose.msra.mxu0 0
      %1160 = vmatprep.subr.bf16.mxu0 0
      %1161 = vmatpush1.bf16.xpose.msra.mxu0 0
      %1162 = vmatprep.subr.bf16.mxu0 0
      %1163 = vmatpush1.bf16.xpose.msra.mxu0 0
      %1164 = vmatprep.subr.bf16.mxu0 0
      %1165 = vmatpush1.bf16.xpose.msra.mxu0 0
      %1166 = vmatprep.mubr.bf16.mxu0 0
      %1167 = vmatmul.mubr.bf16.gmra.mrb[0].mxu0 %v1129
      %v1168 = vpop.f32.mrb[0].mxu0
      %v1169 = vadd.f32 0.0, %v1168
      %v1170 = vpop.f32.mrb[0].mxu0
      %v1171 = vpop.f32.mrb[0].mxu0
      %v1172 = vadd.f32 0.0, %v1171
      %v1173 = vpop.f32.mrb[0].mxu0
      %1174 = vdwg.mxu0
      %v1175 = vmul.f32 %v1118, 0.25
      %v1176 = vmul.f32 %v1121, 0.25
      %v1177 = vmul.f32 %v1169, 0.25
      %v1178 = vmul.f32 %v1172, 0.25
      %v1179 = vsel %vm829, %v1175, -inf
      %1180 = vmax.xlane.f32.xlu0 %v1179
      %v1181 = vpop.xlane.xlu0 %1180
      %v1182 = vsel %vm829, %v1176, -inf
      %1183 = vmax.xlane.f32.xlu0 %v1182
      %v1184 = vpop.xlane.xlu0 %1183
      %v1185 = vsel %vm829, %v1177, -inf
      %1186 = vmax.xlane.f32.xlu0 %v1185
      %v1187 = vpop.xlane.xlu0 %1186
      %v1188 = vsel %vm829, %v1178, -inf
      %1189 = vmax.xlane.f32.xlu0 %v1188
      %v1190 = vpop.xlane.xlu0 %1189
      %v1191 = vsub.f32 %v1175, %v1181
      %v1192 = vsub.f32 %v1176, %v1184
      %v1193 = vsub.f32 %v1177, %v1187
      %v1194 = vsub.f32 %v1178, %v1190
      %v1195 = vmul.f32 %v1191, 1.442695
      %v1196 = vpow.pop %v1195
      %v1197 = vmul.f32 %v1192, 1.442695
      %v1198 = vpow.pop %v1197
      %v1199 = vmul.f32 %v1193, 1.442695
      %v1200 = vpow.pop %v1199
      %v1201 = vmul.f32 %v1194, 1.442695
      %v1202 = vpow.pop %v1201
      %v1203 = vsel %vm829, %v1196, 0.0
      %1204 = vadd.xlane.f32.xlu0 %v1203
      %v1205 = vpop.xlane.xlu0 %1204
      %v1206 = vsel %vm829, %v1198, 0.0
      %1207 = vadd.xlane.f32.xlu0 %v1206
      %v1208 = vpop.xlane.xlu0 %1207
      %v1209 = vsel %vm829, %v1200, 0.0
      %1210 = vadd.xlane.f32.xlu0 %v1209
      %v1211 = vpop.xlane.xlu0 %1210
      %v1212 = vsel %vm829, %v1202, 0.0
      %1213 = vadd.xlane.f32.xlu0 %v1212
      %v1214 = vpop.xlane.xlu0 %1213
      %v1215 = vrcp.pop %v1205
      %v1216 = vrcp.pop %v1208
      %v1217 = vrcp.pop %v1211
      %v1218 = vrcp.pop %v1214
      %v1219 = vmul.f32 %v1196, %v1215
      %v1220 = vmul.f32 %v1198, %v1216
      %v1221 = vmul.f32 %v1200, %v1217
      %v1222 = vmul.f32 %v1202, %v1218
      %v1223 = vpack.c.bf16 %v1220, %v1219
      %v1224 = vpack.c.bf16 %v1222, %v1221
      %1225 = vrot.lane.b32.xlu0 %v824, 48
      %v1226 = vpop.permute.xlu0 %1225
      %v1229 = vsel %vm829, %v1223, 0
      %1231 = vmatprep.subr.bf16.mxu0 0
      %1232 = vmatpush1.bf16.msra.mxu0 %v1226
      %1233 = vmatprep.subr.bf16.mxu0 0
      %1234 = vmatpush1.bf16.msra.mxu0 0
      %1235 = vmatprep.subr.bf16.mxu0 0
      %1236 = vmatpush1.bf16.msra.mxu0 0
      %1237 = vmatprep.subr.bf16.mxu0 0
      %1238 = vmatpush1.bf16.msra.mxu0 0
      %1239 = vmatprep.subr.bf16.mxu0 0
      %1240 = vmatpush1.bf16.msra.mxu0 0
      %1241 = vmatprep.subr.bf16.mxu0 0
      %1242 = vmatpush1.bf16.msra.mxu0 0
      %1243 = vmatprep.subr.bf16.mxu0 0
      %1244 = vmatpush1.bf16.msra.mxu0 0
      %1245 = vmatprep.subr.bf16.mxu0 0
      %1246 = vmatpush1.bf16.msra.mxu0 0
      %1247 = vmatprep.subr.bf16.mxu0 0
      %1248 = vmatpush1.bf16.msra.mxu0 0
      %1249 = vmatprep.subr.bf16.mxu0 0
      %1250 = vmatpush1.bf16.msra.mxu0 0
      %1251 = vmatprep.subr.bf16.mxu0 0
      %1252 = vmatpush1.bf16.msra.mxu0 0
      %1253 = vmatprep.subr.bf16.mxu0 0
      %1254 = vmatpush1.bf16.msra.mxu0 0
      %1255 = vmatprep.subr.bf16.mxu0 0
      %1256 = vmatpush1.bf16.msra.mxu0 0
      %1257 = vmatprep.subr.bf16.mxu0 0
      %1258 = vmatpush1.bf16.msra.mxu0 0
      %1259 = vmatprep.subr.bf16.mxu0 0
      %1260 = vmatpush1.bf16.msra.mxu0 0
      %1261 = vmatprep.subr.bf16.mxu0 0
      %1262 = vmatpush1.bf16.msra.mxu0 0
      %1263 = vmatprep.mubr.bf16.mxu0 0
      %1264 = vmatmul.mubr.bf16.gmra.mrb[0].mxu0 %v1229
      %v1265 = vpop.f32.mrb[0].mxu0
      %v1266 = vadd.f32 0.0, %v1265
      %v1267 = vpop.f32.mrb[0].mxu0
      %v1268 = vpop.f32.mrb[0].mxu0
      %v1269 = vadd.f32 0.0, %v1268
      %v1270 = vpop.f32.mrb[0].mxu0
      %1271 = vdwg.mxu0
      %1272 = vrot.lane.b32.xlu0 %v825, 48
      %v1273 = vpop.permute.xlu0 %1272
      %v1276 = vsel %vm829, %v1224, 0
      %1278 = vmatprep.subr.bf16.mxu0 0
      %1279 = vmatpush1.bf16.msra.mxu0 %v1273
      %1280 = vmatprep.subr.bf16.mxu0 0
      %1281 = vmatpush1.bf16.msra.mxu0 0
      %1282 = vmatprep.subr.bf16.mxu0 0
      %1283 = vmatpush1.bf16.msra.mxu0 0
      %1284 = vmatprep.subr.bf16.mxu0 0
      %1285 = vmatpush1.bf16.msra.mxu0 0
      %1286 = vmatprep.subr.bf16.mxu0 0
      %1287 = vmatpush1.bf16.msra.mxu0 0
      %1288 = vmatprep.subr.bf16.mxu0 0
      %1289 = vmatpush1.bf16.msra.mxu0 0
      %1290 = vmatprep.subr.bf16.mxu0 0
      %1291 = vmatpush1.bf16.msra.mxu0 0
      %1292 = vmatprep.subr.bf16.mxu0 0
      %1293 = vmatpush1.bf16.msra.mxu0 0
      %1294 = vmatprep.subr.bf16.mxu0 0
      %1295 = vmatpush1.bf16.msra.mxu0 0
      %1296 = vmatprep.subr.bf16.mxu0 0
      %1297 = vmatpush1.bf16.msra.mxu0 0
      %1298 = vmatprep.subr.bf16.mxu0 0
      %1299 = vmatpush1.bf16.msra.mxu0 0
      %1300 = vmatprep.subr.bf16.mxu0 0
      %1301 = vmatpush1.bf16.msra.mxu0 0
      %1302 = vmatprep.subr.bf16.mxu0 0
      %1303 = vmatpush1.bf16.msra.mxu0 0
      %1304 = vmatprep.subr.bf16.mxu0 0
      %1305 = vmatpush1.bf16.msra.mxu0 0
      %1306 = vmatprep.subr.bf16.mxu0 0
      %1307 = vmatpush1.bf16.msra.mxu0 0
      %1308 = vmatprep.subr.bf16.mxu0 0
      %1309 = vmatpush1.bf16.msra.mxu0 0
      %1310 = vmatprep.mubr.bf16.mxu0 0
      %1311 = vmatmul.mubr.bf16.gmra.mrb[0].mxu0 %v1276
      %v1312 = vpop.f32.mrb[0].mxu0
      %v1313 = vadd.f32 0.0, %v1312
      %v1314 = vpop.f32.mrb[0].mxu0
      %v1315 = vpop.f32.mrb[0].mxu0
      %v1316 = vadd.f32 0.0, %v1315
      %v1317 = vpop.f32.mrb[0].mxu0
      %1318 = vdwg.mxu0
      %v1319 = vpack.c.bf16 %v1269, %v1266
      %v1320 = vpack.c.bf16 %v1316, %v1313
      %v1322 = vsel %vm829, %v1319, 0
      %v1325 = vsel %vm829, %v1320, 0
      %1327 = vmatprep.subr.bf16.mxu0 0
      %1328 = vmatpush1.bf16.msra.mxu0 %v823
      %1329 = vmatprep.subr.bf16.mxu0 0
      %1330 = vmatpush1.bf16.msra.mxu0 0
      %1331 = vmatprep.subr.bf16.mxu0 0
      %1332 = vmatpush1.bf16.msra.mxu0 0
      %1333 = vmatprep.subr.bf16.mxu0 0
      %1334 = vmatpush1.bf16.msra.mxu0 0
      %1335 = vmatprep.subr.bf16.mxu0 0
      %1336 = vmatpush1.bf16.msra.mxu0 0
      %1337 = vmatprep.subr.bf16.mxu0 0
      %1338 = vmatpush1.bf16.msra.mxu0 0
      %1339 = vmatprep.subr.bf16.mxu0 0
      %1340 = vmatpush1.bf16.msra.mxu0 0
      %1341 = vmatprep.subr.bf16.mxu0 0
      %1342 = vmatpush1.bf16.msra.mxu0 0
      %1343 = vmatprep.subr.bf16.mxu0 0
      %1344 = vmatpush1.bf16.msra.mxu0 0
      %1345 = vmatprep.subr.bf16.mxu0 0
      %1346 = vmatpush1.bf16.msra.mxu0 0
      %1347 = vmatprep.subr.bf16.mxu0 0
      %1348 = vmatpush1.bf16.msra.mxu0 0
      %1349 = vmatprep.subr.bf16.mxu0 0
      %1350 = vmatpush1.bf16.msra.mxu0 0
      %1351 = vmatprep.subr.bf16.mxu0 0
      %1352 = vmatpush1.bf16.msra.mxu0 0
      %1353 = vmatprep.subr.bf16.mxu0 0
      %1354 = vmatpush1.bf16.msra.mxu0 0
      %1355 = vmatprep.subr.bf16.mxu0 0
      %1356 = vmatpush1.bf16.msra.mxu0 0
      %1357 = vmatprep.subr.bf16.mxu0 0
      %1358 = vmatpush1.bf16.msra.mxu0 0
      %1359 = vmatprep.mubr.bf16.mxu0 0
      %1360 = vmatmul.mubr.bf16.gmra.mrb[0].mxu0 %v1322
      %v1361 = vpop.f32.mrb[0].mxu0
      %v1362 = vadd.f32 0.0, %v1361
      %v1363 = vpop.f32.mrb[0].mxu0
      %v1364 = vpop.f32.mrb[0].mxu0
      %v1365 = vadd.f32 0.0, %v1364
      %v1366 = vpop.f32.mrb[0].mxu0
      %1367 = vmatprep.mubr.bf16.mxu0 0
      %1368 = vmatmul.mubr.bf16.gmra.mrb[0].mxu0 %v1325
      %v1369 = vpop.f32.mrb[0].mxu0
      %v1370 = vadd.f32 0.0, %v1369
      %v1371 = vpop.f32.mrb[0].mxu0
      %v1372 = vpop.f32.mrb[0].mxu0
      %v1373 = vadd.f32 0.0, %v1372
      %v1374 = vpop.f32.mrb[0].mxu0
      %1375 = vdwg.mxu0
      %v1377 = vsel %vm829, %v1071, 0
      %v1380 = vsel %vm829, %v1072, 0
      %1382 = vmatprep.subr.bf16.mxu0 0
      %1383 = vmatpush1.bf16.msra.mxu0 %v822
      %1384 = vmatprep.subr.bf16.mxu0 0
      %1385 = vmatpush1.bf16.msra.mxu0 0
      %1386 = vmatprep.subr.bf16.mxu0 0
      %1387 = vmatpush1.bf16.msra.mxu0 0
      %1388 = vmatprep.subr.bf16.mxu0 0
      %1389 = vmatpush1.bf16.msra.mxu0 0
      %1390 = vmatprep.subr.bf16.mxu0 0
      %1391 = vmatpush1.bf16.msra.mxu0 0
      %1392 = vmatprep.subr.bf16.mxu0 0
      %1393 = vmatpush1.bf16.msra.mxu0 0
      %1394 = vmatprep.subr.bf16.mxu0 0
      %1395 = vmatpush1.bf16.msra.mxu0 0
      %1396 = vmatprep.subr.bf16.mxu0 0
      %1397 = vmatpush1.bf16.msra.mxu0 0
      %1398 = vmatprep.subr.bf16.mxu0 0
      %1399 = vmatpush1.bf16.msra.mxu0 0
      %1400 = vmatprep.subr.bf16.mxu0 0
      %1401 = vmatpush1.bf16.msra.mxu0 0
      %1402 = vmatprep.subr.bf16.mxu0 0
      %1403 = vmatpush1.bf16.msra.mxu0 0
      %1404 = vmatprep.subr.bf16.mxu0 0
      %1405 = vmatpush1.bf16.msra.mxu0 0
      %1406 = vmatprep.subr.bf16.mxu0 0
      %1407 = vmatpush1.bf16.msra.mxu0 0
      %1408 = vmatprep.subr.bf16.mxu0 0
      %1409 = vmatpush1.bf16.msra.mxu0 0
      %1410 = vmatprep.subr.bf16.mxu0 0
      %1411 = vmatpush1.bf16.msra.mxu0 0
      %1412 = vmatprep.subr.bf16.mxu0 0
      %1413 = vmatpush1.bf16.msra.mxu0 0
      %1414 = vmatprep.mubr.bf16.mxu0 0
      %1415 = vmatmul.mubr.bf16.gmra.mrb[0].mxu0 %v1377
      %v1416 = vpop.f32.mrb[0].mxu0
      %v1417 = vadd.f32 %v1362, %v1416
      %v1418 = vpop.f32.mrb[0].mxu0
      %v1419 = vpop.f32.mrb[0].mxu0
      %v1420 = vadd.f32 %v1365, %v1419
      %v1421 = vpop.f32.mrb[0].mxu0
      %1422 = vmatprep.mubr.bf16.mxu0 0
      %1423 = vmatmul.mubr.bf16.gmra.mrb[0].mxu0 %v1380
      %v1424 = vpop.f32.mrb[0].mxu0
      %v1425 = vadd.f32 %v1370, %v1424
      %v1426 = vpop.f32.mrb[0].mxu0
      %v1427 = vpop.f32.mrb[0].mxu0
      %v1428 = vadd.f32 %v1373, %v1427
      %v1429 = vpop.f32.mrb[0].mxu0
      %1430 = vdwg.mxu0
      %v1431 = vadd.f32 %v675, %v1417
      %v1432 = vadd.f32 %v676, %v1420
      %v1433 = vadd.f32 %v677, %v1425
      %v1434 = vadd.f32 %v678, %v1428
      %v1435 = vld [vmem:[%s632] sm:$0x1]
      %v1437 = vlaneseq
      %v1438 = vshrl.u32 %v1437, 7
      %v1439 = vsub.s32 0, %v1438
      %v1440 = vrot.slane %v1435, %v1439
      %v1442 = vadd.f32 %v1431, %v1440
      %v1443 = vadd.f32 %v1432, %v1440
      %v1444 = vadd.f32 %v1433, %v1440
      %v1445 = vadd.f32 %v1434, %v1440
      %v1446 = vld [vmem:[%s635] sm:$0x1]
      %v1447 = vld [vmem:[%s638] sm:$0x1]
      %v1448 = vsel %vm681, %v1442, 0.0
      %1449 = vadd.xlane.f32.xlu0 %v1448
      %v1450 = vpop.xlane.xlu0 %1449
      %v1451 = vsel %vm681, %v1443, 0.0
      %1452 = vadd.xlane.f32.xlu0 %v1451
      %v1453 = vpop.xlane.xlu0 %1452
      %v1454 = vsel %vm681, %v1444, 0.0
      %1455 = vadd.xlane.f32.xlu0 %v1454
      %v1456 = vpop.xlane.xlu0 %1455
      %v1457 = vsel %vm681, %v1445, 0.0
      %1458 = vadd.xlane.f32.xlu0 %v1457
      %v1459 = vpop.xlane.xlu0 %1458
      %v1460 = vmul.f32 %v1450, %v694
      %v1461 = vmul.f32 %v1453, %v694
      %v1462 = vmul.f32 %v1456, %v694
      %v1463 = vmul.f32 %v1459, %v694
      %v1464 = vsub.f32 %v1442, %v1460
      %v1465 = vsub.f32 %v1443, %v1461
      %v1466 = vsub.f32 %v1444, %v1462
      %v1467 = vsub.f32 %v1445, %v1463
      %v1468 = vmul.f32 %v1464, %v1464
      %v1469 = vmul.f32 %v1465, %v1465
      %v1470 = vmul.f32 %v1466, %v1466
      %v1471 = vmul.f32 %v1467, %v1467
      %v1472 = vsel %vm681, %v1468, 0.0
      %1473 = vadd.xlane.f32.xlu0 %v1472
      %v1474 = vpop.xlane.xlu0 %1473
      %v1475 = vsel %vm681, %v1469, 0.0
      %1476 = vadd.xlane.f32.xlu0 %v1475
      %v1477 = vpop.xlane.xlu0 %1476
      %v1478 = vsel %vm681, %v1470, 0.0
      %1479 = vadd.xlane.f32.xlu0 %v1478
      %v1480 = vpop.xlane.xlu0 %1479
      %v1481 = vsel %vm681, %v1471, 0.0
      %1482 = vadd.xlane.f32.xlu0 %v1481
      %v1483 = vpop.xlane.xlu0 %1482
      %v1484 = vmul.f32 %v1474, %v694
      %v1485 = vmul.f32 %v1477, %v694
      %v1486 = vmul.f32 %v1480, %v694
      %v1487 = vmul.f32 %v1483, %v694
      %v1488 = vadd.f32 %v1484, 1e-05
      %v1489 = vadd.f32 %v1485, 1e-05
      %v1490 = vadd.f32 %v1486, 1e-05
      %v1491 = vadd.f32 %v1487, 1e-05
      %v1492 = vrsqrt.pop %v1488
      %v1493 = vrsqrt.pop %v1489
      %v1494 = vrsqrt.pop %v1490
      %v1495 = vrsqrt.pop %v1491
      %v1496 = vmul.f32 %v1464, %v1492
      %v1497 = vmul.f32 %v1465, %v1493
      %v1498 = vmul.f32 %v1466, %v1494
      %v1499 = vmul.f32 %v1467, %v1495
      %v1501 = vlaneseq
      %v1502 = vshrl.u32 %v1501, 7
      %v1503 = vsub.s32 0, %v1502
      %v1504 = vrot.slane %v1446, %v1503
      %v1506 = vmul.f32 %v1496, %v1504
      %v1507 = vmul.f32 %v1497, %v1504
      %v1508 = vmul.f32 %v1498, %v1504
      %v1509 = vmul.f32 %v1499, %v1504
      %v1511 = vlaneseq
      %v1512 = vshrl.u32 %v1511, 7
      %v1513 = vsub.s32 0, %v1512
      %v1514 = vrot.slane %v1447, %v1513
      %v1516 = vadd.f32 %v1506, %v1514
      %v1517 = vadd.f32 %v1507, %v1514
      %v1518 = vadd.f32 %v1508, %v1514
      %v1519 = vadd.f32 %v1509, %v1514
      %v1520 = vpack.c.bf16 %v1517, %v1516
      %v1521 = vpack.c.bf16 %v1519, %v1518
      %v1522 = vld [vmem:[%s643] sm:$0xff]
      %v1523 = vld [vmem:[%s643 + $0x8] sm:$0xff]
      %v1524 = vld [vmem:[%s643 + $0x10] sm:$0xff]
      %v1525 = vld [vmem:[%s643 + $0x18] sm:$0xff]
      %v1526 = vpack.c.bf16 %v1523, %v1522
      %v1527 = vpack.c.bf16 %v1525, %v1524
      %v1528 = vld [vmem:[%s646] sm:$0x1]
      %v1530 = vlaneseq
      %v1531 = vshrl.u32 %v1530, 7
      %v1532 = vsub.s32 0, %v1531
      %v1533 = vrot.slane %v1528, %v1532
      %v1536 = vsel %vm681, %v1520, 0
      %v1539 = vsel %vm681, %v1521, 0
      %1541 = vmatprep.subr.bf16.mxu0 0
      %1542 = vmatpush1.bf16.msra.mxu0 %v1526
      %1543 = vmatprep.subr.bf16.mxu0 0
      %1544 = vmatpush1.bf16.msra.mxu0 %v1527
      %1545 = vmatprep.subr.bf16.mxu0 0
      %1546 = vmatpush1.bf16.msra.mxu0 0
      %1547 = vmatprep.subr.bf16.mxu0 0
      %1548 = vmatpush1.bf16.msra.mxu0 0
      %1549 = vmatprep.subr.bf16.mxu0 0
      %1550 = vmatpush1.bf16.msra.mxu0 0
      %1551 = vmatprep.subr.bf16.mxu0 0
      %1552 = vmatpush1.bf16.msra.mxu0 0
      %1553 = vmatprep.subr.bf16.mxu0 0
      %1554 = vmatpush1.bf16.msra.mxu0 0
      %1555 = vmatprep.subr.bf16.mxu0 0
      %1556 = vmatpush1.bf16.msra.mxu0 0
      %1557 = vmatprep.subr.bf16.mxu0 0
      %1558 = vmatpush1.bf16.msra.mxu0 0
      %1559 = vmatprep.subr.bf16.mxu0 0
      %1560 = vmatpush1.bf16.msra.mxu0 0
      %1561 = vmatprep.subr.bf16.mxu0 0
      %1562 = vmatpush1.bf16.msra.mxu0 0
      %1563 = vmatprep.subr.bf16.mxu0 0
      %1564 = vmatpush1.bf16.msra.mxu0 0
      %1565 = vmatprep.subr.bf16.mxu0 0
      %1566 = vmatpush1.bf16.msra.mxu0 0
      %1567 = vmatprep.subr.bf16.mxu0 0
      %1568 = vmatpush1.bf16.msra.mxu0 0
      %1569 = vmatprep.subr.bf16.mxu0 0
      %1570 = vmatpush1.bf16.msra.mxu0 0
      %1571 = vmatprep.subr.bf16.mxu0 0
      %1572 = vmatpush1.bf16.msra.mxu0 0
      %1573 = vmatprep.mubr.bf16.mxu0 0
      %1574 = vmatmul.mubr.bf16.gmra.mrb[0].mxu0 %v1536
      %v1575 = vpop.f32.mrb[0].mxu0
      %v1576 = vadd.f32 %v1533, %v1575
      %v1577 = vpop.f32.mrb[0].mxu0
      %v1578 = vpop.f32.mrb[0].mxu0
      %v1579 = vadd.f32 %v1533, %v1578
      %v1580 = vpop.f32.mrb[0].mxu0
      %1581 = vmatprep.mubr.bf16.mxu0 0
      %1582 = vmatmul.mubr.bf16.gmra.mrb[0].mxu0 %v1539
      %v1583 = vpop.f32.mrb[0].mxu0
      %v1584 = vadd.f32 %v1533, %v1583
      %v1585 = vpop.f32.mrb[0].mxu0
      %v1586 = vpop.f32.mrb[0].mxu0
      %v1587 = vadd.f32 %v1533, %v1586
      %v1588 = vpop.f32.mrb[0].mxu0
      %1589 = vdwg.mxu0
      %v1590 = vmul.f32 %v1576, %v1576
      %v1591 = vmul.f32 %v1579, %v1579
      %v1592 = vmul.f32 %v1584, %v1584
      %v1593 = vmul.f32 %v1587, %v1587
      %v1594 = vmul.f32 %v1576, %v1590
      %v1595 = vmul.f32 %v1579, %v1591
      %v1596 = vmul.f32 %v1584, %v1592
      %v1597 = vmul.f32 %v1587, %v1593
      %v1598 = vmul.f32 %v1594, 0.044715
      %v1599 = vmul.f32 %v1595, 0.044715
      %v1600 = vmul.f32 %v1596, 0.044715
      %v1601 = vmul.f32 %v1597, 0.044715
      %v1602 = vadd.f32 %v1576, %v1598
      %v1603 = vadd.f32 %v1579, %v1599
      %v1604 = vadd.f32 %v1584, %v1600
      %v1605 = vadd.f32 %v1587, %v1601
      %v1606 = vmul.f32 %v1602, 0.7978846
      %v1607 = vmul.f32 %v1603, 0.7978846
      %v1608 = vmul.f32 %v1604, 0.7978846
      %v1609 = vmul.f32 %v1605, 0.7978846
      %v1610 = vtanh.pop %v1606
      %v1611 = vtanh.pop %v1607
      %v1612 = vtanh.pop %v1608
      %v1613 = vtanh.pop %v1609
      %v1614 = vadd.f32 %v1610, 1.0
      %v1615 = vadd.f32 %v1611, 1.0
      %v1616 = vadd.f32 %v1612, 1.0
      %v1617 = vadd.f32 %v1613, 1.0
      %v1618 = vmul.f32 %v1614, 0.5
      %v1619 = vmul.f32 %v1615, 0.5
      %v1620 = vmul.f32 %v1616, 0.5
      %v1621 = vmul.f32 %v1617, 0.5
      %v1622 = vmul.f32 %v1576, %v1618
      %v1623 = vmul.f32 %v1579, %v1619
      %v1624 = vmul.f32 %v1584, %v1620
      %v1625 = vmul.f32 %v1587, %v1621
      %v1626 = vpack.c.bf16 %v1623, %v1622
      %v1627 = vpack.c.bf16 %v1625, %v1624
      %v1628 = vld [vmem:[%s651] sm:$0xff]
      %v1629 = vld [vmem:[%s651 + $0x8] sm:$0xff]
      %v1630 = vld [vmem:[%s651 + $0x10] sm:$0xff]
      %v1631 = vld [vmem:[%s651 + $0x18] sm:$0xff]
      %v1632 = vld [vmem:[%s651 + $0x20] sm:$0xff]
      %v1633 = vld [vmem:[%s651 + $0x28] sm:$0xff]
      %v1634 = vld [vmem:[%s651 + $0x30] sm:$0xff]
      %v1635 = vld [vmem:[%s651 + $0x38] sm:$0xff]
      %v1636 = vpack.c.bf16 %v1629, %v1628
      %v1637 = vpack.c.bf16 %v1631, %v1630
      %v1638 = vpack.c.bf16 %v1633, %v1632
      %v1639 = vpack.c.bf16 %v1635, %v1634
      %v1640 = vld [vmem:[%s654] sm:$0x1]
      %v1642 = vlaneseq
      %v1643 = vshrl.u32 %v1642, 7
      %v1644 = vsub.s32 0, %v1643
      %v1645 = vrot.slane %v1640, %v1644
      %vm1647 = vcmask 523264
      %v1649 = vsel %vm1647, %v1626, 0
      %v1652 = vsel %vm1647, %v1627, 0
      %1654 = vmatprep.subr.bf16.mxu0 0
      %1655 = vmatpush1.bf16.msra.mxu0 %v1636
      %1656 = vmatprep.subr.bf16.mxu0 0
      %1657 = vmatpush1.bf16.msra.mxu0 %v1637
      %1658 = vmatprep.subr.bf16.mxu0 0
      %1659 = vmatpush1.bf16.msra.mxu0 %v1638
      %1660 = vmatprep.subr.bf16.mxu0 0
      %1661 = vmatpush1.bf16.msra.mxu0 %v1639
      %1662 = vmatprep.subr.bf16.mxu0 0
      %1663 = vmatpush1.bf16.msra.mxu0 0
      %1664 = vmatprep.subr.bf16.mxu0 0
      %1665 = vmatpush1.bf16.msra.mxu0 0
      %1666 = vmatprep.subr.bf16.mxu0 0
      %1667 = vmatpush1.bf16.msra.mxu0 0
      %1668 = vmatprep.subr.bf16.mxu0 0
      %1669 = vmatpush1.bf16.msra.mxu0 0
      %1670 = vmatprep.subr.bf16.mxu0 0
      %1671 = vmatpush1.bf16.msra.mxu0 0
      %1672 = vmatprep.subr.bf16.mxu0 0
      %1673 = vmatpush1.bf16.msra.mxu0 0
      %1674 = vmatprep.subr.bf16.mxu0 0
      %1675 = vmatpush1.bf16.msra.mxu0 0
      %1676 = vmatprep.subr.bf16.mxu0 0
      %1677 = vmatpush1.bf16.msra.mxu0 0
      %1678 = vmatprep.subr.bf16.mxu0 0
      %1679 = vmatpush1.bf16.msra.mxu0 0
      %1680 = vmatprep.subr.bf16.mxu0 0
      %1681 = vmatpush1.bf16.msra.mxu0 0
      %1682 = vmatprep.subr.bf16.mxu0 0
      %1683 = vmatpush1.bf16.msra.mxu0 0
      %1684 = vmatprep.subr.bf16.mxu0 0
      %1685 = vmatpush1.bf16.msra.mxu0 0
      %1686 = vmatprep.mubr.bf16.mxu0 0
      %1687 = vmatmul.mubr.bf16.gmra.mrb[0].mxu0 %v1649
      %v1688 = vpop.f32.mrb[0].mxu0
      %v1689 = vadd.f32 %v1645, %v1688
      %v1690 = vpop.f32.mrb[0].mxu0
      %v1691 = vpop.f32.mrb[0].mxu0
      %v1692 = vadd.f32 %v1645, %v1691
      %v1693 = vpop.f32.mrb[0].mxu0
      %1694 = vmatprep.mubr.bf16.mxu0 0
      %1695 = vmatmul.mubr.bf16.gmra.mrb[0].mxu0 %v1652
      %v1696 = vpop.f32.mrb[0].mxu0
      %v1697 = vadd.f32 %v1645, %v1696
      %v1698 = vpop.f32.mrb[0].mxu0
      %v1699 = vpop.f32.mrb[0].mxu0
      %v1700 = vadd.f32 %v1645, %v1699
      %v1701 = vpop.f32.mrb[0].mxu0
      %1702 = vdwg.mxu0
      %v1703 = vadd.f32 %v1442, %v1689
      %v1704 = vadd.f32 %v1443, %v1692
      %v1705 = vadd.f32 %v1444, %v1697
      %v1706 = vadd.f32 %v1445, %v1700
      %1707 = vst.msk [vmem:[#allocation2] sm:$0xff] %vm681, %v1703
      %1708 = vst.msk [vmem:[#allocation2 + $0x8] sm:$0xff] %vm681, %v1704
      %1709 = vst.msk [vmem:[#allocation2 + $0x10] sm:$0xff] %vm681, %v1705
      %1710 = vst.msk [vmem:[#allocation2 + $0x18] sm:$0xff] %vm681, %v1706
      %p1711 = scmp.eq.s32.totalorder %s30, 1
      // Predicated region
      $region81: #{vq_sparse_diffusion_forward.1} parent=75 // pred_check
        %p1712 = pneg %p1711
      $region82: #{vq_sparse_diffusion_forward.1} parent=75 // pred_check_branch
        %1714 = sbr.rel (%p1712) target = $region84
      $region83: #{vq_sparse_diffusion_forward.1} parent=75 // pred_region
        %v1715 = vpack.c.bf16 %v1704, %v1703
        %v1716 = vpack.c.bf16 %v1706, %v1705
        %v1717 = vld [vmem:[%s12] sm:$0xff]
        %v1718 = vld [vmem:[%s12 + $0x8] sm:$0xff]
        %v1719 = vld [vmem:[%s12 + $0x10] sm:$0xff]
        %v1720 = vld [vmem:[%s12 + $0x18] sm:$0xff]
        %v1721 = vpack.c.bf16 %v1718, %v1717
        %v1722 = vpack.c.bf16 %v1720, %v1719
        %v1723 = vld [vmem:[%s13] sm:$0x1]
        %v1725 = vlaneseq
        %v1726 = vshrl.u32 %v1725, 7
        %v1727 = vsub.s32 0, %v1726
        %v1728 = vrot.slane %v1723, %v1727
        %v1731 = vsel %vm681, %v1715, 0
        %v1734 = vsel %vm681, %v1716, 0
        %1736 = vmatprep.subr.bf16.mxu0 0
        %1737 = vmatpush1.bf16.msra.mxu0 %v1721
        %1738 = vmatprep.subr.bf16.mxu0 0
        %1739 = vmatpush1.bf16.msra.mxu0 %v1722
        %1740 = vmatprep.subr.bf16.mxu0 0
        %1741 = vmatpush1.bf16.msra.mxu0 0
        %1742 = vmatprep.subr.bf16.mxu0 0
        %1743 = vmatpush1.bf16.msra.mxu0 0
        %1744 = vmatprep.subr.bf16.mxu0 0
        %1745 = vmatpush1.bf16.msra.mxu0 0
        %1746 = vmatprep.subr.bf16.mxu0 0
        %1747 = vmatpush1.bf16.msra.mxu0 0
        %1748 = vmatprep.subr.bf16.mxu0 0
        %1749 = vmatpush1.bf16.msra.mxu0 0
        %1750 = vmatprep.subr.bf16.mxu0 0
        %1751 = vmatpush1.bf16.msra.mxu0 0
        %1752 = vmatprep.subr.bf16.mxu0 0
        %1753 = vmatpush1.bf16.msra.mxu0 0
        %1754 = vmatprep.subr.bf16.mxu0 0
        %1755 = vmatpush1.bf16.msra.mxu0 0
        %1756 = vmatprep.subr.bf16.mxu0 0
        %1757 = vmatpush1.bf16.msra.mxu0 0
        %1758 = vmatprep.subr.bf16.mxu0 0
        %1759 = vmatpush1.bf16.msra.mxu0 0
        %1760 = vmatprep.subr.bf16.mxu0 0
        %1761 = vmatpush1.bf16.msra.mxu0 0
        %1762 = vmatprep.subr.bf16.mxu0 0
        %1763 = vmatpush1.bf16.msra.mxu0 0
        %1764 = vmatprep.subr.bf16.mxu0 0
        %1765 = vmatpush1.bf16.msra.mxu0 0
        %1766 = vmatprep.subr.bf16.mxu0 0
        %1767 = vmatpush1.bf16.msra.mxu0 0
        %1768 = vmatprep.mubr.bf16.mxu0 0
        %1769 = vmatmul.mubr.bf16.gmra.mrb[0].mxu0 %v1731
        %v1770 = vpop.f32.mrb[0].mxu0
        %v1771 = vadd.f32 %v1728, %v1770
        %v1772 = vpop.f32.mrb[0].mxu0
        %v1773 = vpop.f32.mrb[0].mxu0
        %v1774 = vadd.f32 %v1728, %v1773
        %v1775 = vpop.f32.mrb[0].mxu0
        %1776 = vmatprep.mubr.bf16.mxu0 0
        %1777 = vmatmul.mubr.bf16.gmra.mrb[0].mxu0 %v1734
        %v1778 = vpop.f32.mrb[0].mxu0
        %v1779 = vadd.f32 %v1728, %v1778
        %v1780 = vpop.f32.mrb[0].mxu0
        %v1781 = vpop.f32.mrb[0].mxu0
        %v1782 = vadd.f32 %v1728, %v1781
        %v1783 = vpop.f32.mrb[0].mxu0
        %1784 = vdwg.mxu0
        %1785 = vst [vmem:[%s659] sm:$0xff] %v1771
        %1786 = vst [vmem:[%s659 + $0x8] sm:$0xff] %v1774
        %1787 = vst [vmem:[%s659 + $0x10] sm:$0xff] %v1779
        %1788 = vst [vmem:[%s659 + $0x18] sm:$0xff] %v1782
      $region84: #{vq_sparse_diffusion_forward.1} parent=75 // pred_fallthru
        _
      %s1789 = smul.u32 4, %s29
      %p1790 = scmp.lt.s32.totalorder %s1789, 3
      %s1791 = scalar_select %p1790, %s1789, 3
      %s1792 = smul.addr %s1791, 8
      %s1793 = scalar_lea.vmem %s14, %s1792
      // Predicated region
      $region85: #{vq_sparse_diffusion_forward.1} parent=75 // pred_check
        %p1794 = pneg %p409
      $region86: #{vq_sparse_diffusion_forward.1} parent=75 // pred_check_branch
        %1796 = sbr.rel (%p1794) target = $region88
      $region87: #{vq_sparse_diffusion_forward.1} parent=75 // pred_region
        %s1797 = smul.u32 4, %s29
      $region88: #{vq_sparse_diffusion_forward.1} parent=75 // pred_fallthru
        _
      // Predicated region
      $region89: #{vq_sparse_diffusion_forward.1} parent=75 // pred_check
        %p1798 = pneg %p409
      $region90: #{vq_sparse_diffusion_forward.1} parent=75 // pred_check_branch
        %1800 = sbr.rel (%p1798) target = $region92
      $region91: #{vq_sparse_diffusion_forward.1} parent=75 // pred_region
        %s1801 = smul.u32 4, %s29
        %p1802 = scmp.lt.s32.totalorder %s1801, 3
        %s1803 = scalar_select %p1802, %s1801, 3
        %s1804 = smul.addr %s1803, 8
        %s1805 = scalar_lea.vmem %s14, %s1804
      $region92: #{vq_sparse_diffusion_forward.1} parent=75 // pred_fallthru
        _
    $region76: #{vq_sparse_diffusion_forward.1} parent=5 // pred_fallthru
      _
    %p1806 = scmp.le.s32.totalorder 2, %s20
    // Predicated region
    $region93: #{vq_sparse_diffusion_forward.1} parent=5 // pred_check
      %p1807 = pneg %p1806
    $region94: #{vq_sparse_diffusion_forward.1} parent=5 // pred_check_branch
      %1809 = sbr.rel (%p1807) target = $region96
    $region95: #{vq_sparse_diffusion_forward.1} parent=5 // pred_region
      %s1810 = ssub.s32 %s20, 2
    $region96: #{vq_sparse_diffusion_forward.1} parent=5 // pred_fallthru
      _
  $region6: #{vq_sparse_diffusion_forward.1} parent=0 // loop_footer
    %s24 = sadd.s32 1, %s20
  $region7: #{vq_sparse_diffusion_forward.1} parent=0 // loop_footer_branch
    %19 = sbr.rel target = $region3
  $region8: #{vq_sparse_diffusion_forward.1} parent=0 // loop_exit
    _

</llo_original>
